<compile_context>
chip_gen: v7x
topology: tpu7x:2x2x1
jax: 0.10.0
libtpu: 0.0.40
codegen_flags: <defaults>
</compile_context>

<pallas_src>
import math

import jax
import jax.numpy as jnp
from jax.experimental import pallas as pl
from jax.experimental.pallas import tpu as pltpu

# ----------------------------- model config ---------------------------------
EMBED_DIM = 128          # embedding_dim
NUM_HEADS = 8            # num_heads
HEAD_DIM = EMBED_DIM // NUM_HEADS
NUM_LAYERS = 3           # num_encoder_layers
FF_HIDDEN = 512          # feed_forward_hidden (AM default)
TANH_CLIP = 10.0         # tanh clipping on logits (AM default)
BN_EPS = 1e-5            # BatchNorm1d eps

MM_DTYPE = jnp.bfloat16  # MXU operand dtype (jnp.float32 for exact parity)
ACT_DTYPE = jnp.bfloat16 # dtype of decoder-resident emb / gkvl tensors


# ----------------------------- in-kernel math helpers ------------------------
def _dot(a, b):
    return jnp.dot(a.astype(MM_DTYPE), b.astype(MM_DTYPE),
                   preferred_element_type=jnp.float32)


def _bmm_qk(a, b):
    # (B, n, d) x (B, k, d) -> (B, n, k), contraction over the minor dim d.
    return jnp.einsum('bnd,bkd->bnk', a.astype(MM_DTYPE), b.astype(MM_DTYPE),
                      preferred_element_type=jnp.float32)


def _bmm_av(a, v):
    # (B, n, k) x (B, k, d) -> (B, n, d)
    return jnp.einsum('bnk,bkd->bnd', a.astype(MM_DTYPE), v.astype(MM_DTYPE),
                      preferred_element_type=jnp.float32)


def _softmax_lastdim(x):
    m = jnp.max(x, axis=-1, keepdims=True)
    e = jnp.exp(x - m)
    return e * pl.reciprocal(jnp.sum(e, axis=-1, keepdims=True), approx=True)


# ----------------------------- Pallas kernels --------------------------------
def encoder_mha_kernel(x_ref, scale_ref, shift_ref, wqkv_ref, wo_ref,
                       h1_ref, sum_ref, sumsq_ref):
    """MHA + residual for one batch tile.  Previous BatchNorm is folded in as
    an affine (scale, shift); per-head outputs stay in registers and are
    lane-concatenated before the concat-heads Wo matmul.  Also emits per-tile
    BN partial statistics (sum, sum of squares)."""
    bt, n, d = x_ref.shape
    inv_sqrt_dk = 1.0 / math.sqrt(HEAD_DIM)

    x = x_ref[...] * scale_ref[...] + shift_ref[...]
    x2 = x.reshape(bt * n, d)

    qkv = _dot(x2, wqkv_ref[...])                              # (bt*n, 3D)
    q = qkv[:, 0 * d:1 * d].reshape(bt, n, d)
    k = qkv[:, 1 * d:2 * d].reshape(bt, n, d)
    v = qkv[:, 2 * d:3 * d].reshape(bt, n, d)

    heads = []
    for hh in range(NUM_HEADS):                                # static head loop
        sl = slice(hh * HEAD_DIM, (hh + 1) * HEAD_DIM)
        compat = _bmm_qk(q[:, :, sl], k[:, :, sl]) * inv_sqrt_dk   # (bt, n, n)
        attn = _softmax_lastdim(compat)
        heads.append(_bmm_av(attn, v[:, :, sl]))                   # (bt, n, dk)
    mha_in = jnp.concatenate(heads, axis=-1).reshape(bt * n, d)    # register concat

    h1 = x2 + _dot(mha_in, wo_ref[...])                        # residual
    h1_ref[...] = h1.reshape(bt, n, d)
    sum_ref[...] = jnp.sum(h1, axis=0).reshape(1, 1, d)        # BN partials
    sumsq_ref[...] = jnp.sum(h1 * h1, axis=0).reshape(1, 1, d)


def encoder_ffn_kernel(h1_ref, scale_ref, shift_ref, w1_ref, b1_ref,
                       w2_ref, b2_ref, h2_ref, sum_ref, sumsq_ref):
    """BN1 normalize (folded affine) + FFN + residual + BN partial stats."""
    bt, n, d = h1_ref.shape
    hn = (h1_ref[...] * scale_ref[...] + shift_ref[...]).reshape(bt * n, d)
    f = jnp.maximum(_dot(hn, w1_ref[...]) + b1_ref[...], 0.0)
    f = _dot(f, w2_ref[...]) + b2_ref[...]
    h2 = hn + f
    h2_ref[...] = h2.reshape(bt, n, d)
    sum_ref[...] = jnp.sum(h2, axis=0).reshape(1, 1, d)
    sumsq_ref[...] = jnp.sum(h2 * h2, axis=0).reshape(1, 1, d)


def decoder_precompute_kernel(x_ref, scale_ref, shift_ref, wnode_ref, wfix_ref,
                              emb_ref, gkvl_ref, fixed_ref):
    """Final encoder BN (folded) + fused project_node_embeddings (gk|gv|lk as
    one (D,3D) matmul, emitted bf16) + project_fixed_context, batch tiled."""
    bt, n, d = x_ref.shape
    emb = x_ref[...] * scale_ref[...] + shift_ref[...]
    e2 = emb.reshape(bt * n, d)
    gkvl_ref[...] = _dot(e2, wnode_ref[...]).astype(gkvl_ref.dtype).reshape(bt, n, 3 * d)
    graph = jnp.mean(emb, axis=1)                              # (bt, D)
    fixed_ref[...] = _dot(graph, wfix_ref[...])[:, None, :]    # (bt, 1, D)
    emb_ref[...] = emb.astype(emb_ref.dtype)


def _rollout_body(noise_ref, emb_ref, gkvl_ref, fixed_ref, wstep_ref, wout_ref,
                  wph_ref, act_ref, ll_ref, ent_ref,
                  visited_ref, first_ref, cur_ref):
    """One autoregressive decode step.  Grid = (batch_tile, step); outputs
    (actions / selected-logp / entropy) accumulate into VMEM-resident (bt, N)
    blocks, state persists in VMEM scratch."""
    step = pl.program_id(1)
    b, n, d = emb_ref.shape
    dk = HEAD_DIM
    inv_sqrt_dk = 1.0 / math.sqrt(dk)

    @pl.when(step == 0)
    def _init():
        visited_ref[...] = jnp.zeros_like(visited_ref)
        first_ref[...] = jnp.zeros_like(first_ref)
        cur_ref[...] = jnp.zeros_like(cur_ref)
        act_ref[...] = jnp.zeros_like(act_ref)
        ll_ref[...] = jnp.zeros_like(ll_ref)
        ent_ref[...] = jnp.zeros_like(ent_ref)

    visited = visited_ref[...] > 0.5                            # (b, n) bool
    is_first = step == 0

    # step context = [first node emb, current node emb]; learned placeholder at step 0
    wph = wph_ref[...]                                          # (1, 2D)
    ctx_first = jnp.where(is_first, jnp.broadcast_to(wph[:, :d], (b, d)),
                          first_ref[...])
    ctx_cur = jnp.where(is_first, jnp.broadcast_to(wph[:, d:], (b, d)),
                        cur_ref[...])
    ctx = jnp.concatenate([ctx_first, ctx_cur], axis=-1)        # (b, 2D)
    q = fixed_ref[...][:, 0, :] + _dot(ctx, wstep_ref[...])     # one 256-deep matmul

    vmask = visited[:, None, :]                                 # (b, 1, n)
    heads = []
    # TODO(synk): dk=16 single-row matmuls underfill the 256-deep MXU; collapse
    #             heads into the contraction if the bundle dump shows them dominant.
    for hh in range(NUM_HEADS):                                 # static head loop
        ksl = slice(hh * dk, (hh + 1) * dk)
        vsl = slice(d + hh * dk, d + (hh + 1) * dk)
        compat = _bmm_qk(q[:, None, ksl], gkvl_ref[:, :, ksl]) * inv_sqrt_dk
        compat = jnp.where(vmask, -jnp.inf, compat)             # mask_inner
        attn = _softmax_lastdim(compat)                         # (b, 1, n)
        heads.append(_bmm_av(attn, gkvl_ref[:, :, vsl]))        # (b, 1, dk)
    glimpse = _dot(jnp.concatenate(heads, axis=-1)[:, 0, :], wout_ref[...])  # (b, D)

    lk = gkvl_ref[:, :, 2 * d:3 * d]                            # (b, n, D) logit K
    logits = _bmm_qk(glimpse[:, None, :], lk)[:, 0, :] * (1.0 / math.sqrt(d))
    logits = jnp.tanh(logits) * TANH_CLIP
    logits = jnp.where(visited, -jnp.inf, logits)

    # masked log-softmax over nodes (exact logsumexp)
    m = jnp.max(logits, axis=-1, keepdims=True)
    z = logits - m
    lse = jnp.log(jnp.sum(jnp.exp(z), axis=-1, keepdims=True))
    logp = z - lse                                              # (b, n)

    # greedy argmax / Gumbel-max sampling (noise precomputed host-side)
    score = logp if noise_ref is None else logp + noise_ref[0]

    ids = jax.lax.broadcasted_iota(jnp.int32, (b, n), 1)
    best = jnp.max(score, axis=-1, keepdims=True)
    action = jnp.min(jnp.where(score >= best, ids, n),
                     axis=-1, keepdims=True)                    # (b, 1), first best
    sel = ids == action                                         # (b, n) bool
    onehot = sel.astype(jnp.float32)

    # state update for the next decode step
    visited_ref[...] = jnp.maximum(visited_ref[...], onehot)
    emb_sel = _bmm_av(onehot[:, None, :], emb_ref[...])[:, 0, :]   # MXU gather
    cur_ref[...] = emb_sel
    first_ref[...] = jnp.where(is_first, emb_sel, first_ref[...])

    # per-step scalars, accumulated into the step-th column of the outputs
    sel_logp = jnp.sum(jnp.where(sel, logp, 0.0), axis=-1, keepdims=True)    # (b, 1)
    plogp = jnp.where(visited, 0.0, jnp.exp(logp) * logp)       # visited -> 0 (nan_to_num)
    ent_step = -jnp.sum(plogp, axis=-1, keepdims=True)          # (b, 1)

    step_oh = ids == step                                       # (b, n): column == step
    act_ref[...] += step_oh.astype(jnp.int32) * action
    step_oh_f = step_oh.astype(jnp.float32)
    ll_ref[...] += step_oh_f * sel_logp
    ent_ref[...] += step_oh_f * ent_step


def make_rollout_kernel(sample):
    if sample:
        def rollout_kernel(noise_ref, *refs):
            _rollout_body(noise_ref, *refs)
    else:
        def rollout_kernel(*refs):
            _rollout_body(None, *refs)
    return rollout_kernel


# ----------------------------- JAX glue / wrappers ---------------------------
def _vmem_limit_bytes():
    # Generation-aware VMEM limit: ~75% of physical capacity (v5e/v6e: ~96 MiB,
    # v7x: ~48 MiB).  Falls back to a safe 64 MiB if no TPU is queryable.
    try:
        cap = int(pltpu.get_tpu_info().vmem_capacity_bytes)
        return max(cap * 3 // 4, 32 * 1024 * 1024)
    except Exception:
        return 64 * 1024 * 1024


def _compiler_params(semantics):
    return pltpu.CompilerParams(dimension_semantics=semantics,
                                vmem_limit_bytes=_vmem_limit_bytes())


def _pick_batch_tile(batch, cap=64):
    bt = min(batch, cap)
    while batch % bt:
        bt -= 1
    return bt


def _pick_decode_tile(batch, cap=128):
    # Decode-tile must equal the batch or be a multiple of 8 (sublane-aligned
    # output blocks) and divide the batch.
    if batch <= cap:
        return batch
    bt = (cap // 8) * 8
    while bt >= 8:
        if batch % bt == 0:
            return bt
        bt -= 8
    return batch


def _bn_affine(psum, psumsq, count, gamma, beta):
    # Reduce per-tile partial stats (no re-read of the full activation).
    mean = jnp.sum(psum, axis=0).reshape(1, -1) / count
    ex2 = jnp.sum(psumsq, axis=0).reshape(1, -1) / count
    var = jnp.maximum(ex2 - mean * mean, 0.0)
    scale = gamma * jax.lax.rsqrt(var + BN_EPS)
    shift = beta - mean * scale
    return scale, shift


def _encoder_layer(x_raw, scale, shift, lp, bt):
    bsz, n, d = x_raw.shape
    tiles = bsz // bt
    grid = (tiles,)
    xmap = lambda i: (i, 0, 0)
    wmap = lambda i: (0, 0)
    stat_spec = pl.BlockSpec((1, 1, d), lambda i: (i, 0, 0))
    stat_shape = jax.ShapeDtypeStruct((tiles, 1, d), jnp.float32)

    h1, s1, ss1 = pl.pallas_call(
        encoder_mha_kernel,
        grid=grid,
        in_specs=[pl.BlockSpec((bt, n, d), xmap),
                  pl.BlockSpec((1, d), wmap),
                  pl.BlockSpec((1, d), wmap),
                  pl.BlockSpec((d, 3 * d), wmap),
                  pl.BlockSpec((d, d), wmap)],
        out_specs=(pl.BlockSpec((bt, n, d), xmap), stat_spec, stat_spec),
        out_shape=(jax.ShapeDtypeStruct((bsz, n, d), jnp.float32),
                   stat_shape, stat_shape),
        compiler_params=_compiler_params(("parallel",)),
    )(x_raw, scale, shift, lp['Wqkv'], lp['Wo'])

    scale1, shift1 = _bn_affine(s1, ss1, bsz * n, lp['bn1_g'], lp['bn1_b'])

    h2, s2, ss2 = pl.pallas_call(
        encoder_ffn_kernel,
        grid=grid,
        in_specs=[pl.BlockSpec((bt, n, d), xmap),
                  pl.BlockSpec((1, d), wmap),
                  pl.BlockSpec((1, d), wmap),
                  pl.BlockSpec((d, FF_HIDDEN), wmap),
                  pl.BlockSpec((1, FF_HIDDEN), wmap),
                  pl.BlockSpec((FF_HIDDEN, d), wmap),
                  pl.BlockSpec((1, d), wmap)],
        out_specs=(pl.BlockSpec((bt, n, d), xmap), stat_spec, stat_spec),
        out_shape=(jax.ShapeDtypeStruct((bsz, n, d), jnp.float32),
                   stat_shape, stat_shape),
        compiler_params=_compiler_params(("parallel",)),
    )(h1, scale1, shift1, lp['W1'], lp['b1'], lp['W2'], lp['b2'])

    scale2, shift2 = _bn_affine(s2, ss2, bsz * n, lp['bn2_g'], lp['bn2_b'])
    return h2, scale2, shift2


def encode(locs, params):
    bsz, n, _ = locs.shape
    d = EMBED_DIM
    # init embedding (tiny 2->D linear, left in XLA)
    x = jnp.einsum('bnc,cd->bnd', locs, params['init_W']) + params['init_b']
    scale = jnp.ones((1, d), jnp.float32)        # identity "previous BN" for layer 0
    shift = jnp.zeros((1, d), jnp.float32)
    bt = _pick_batch_tile(bsz)
    for lp in params['layers']:
        x, scale, shift = _encoder_layer(x, scale, shift, lp, bt)
    return x, scale, shift                        # raw last-layer output + folded final BN


def decode(emb_raw, scale, shift, params, decode_type='greedy', seed=0):
    bsz, n, d = emb_raw.shape
    bt = _pick_batch_tile(bsz)
    grid = (bsz // bt,)
    xmap = lambda i: (i, 0, 0)
    wmap = lambda i: (0, 0)

    emb, gkvl, fixed = pl.pallas_call(
        decoder_precompute_kernel,
        grid=grid,
        in_specs=[pl.BlockSpec((bt, n, d), xmap),
                  pl.BlockSpec((1, d), wmap),
                  pl.BlockSpec((1, d), wmap),
                  pl.BlockSpec((d, 3 * d), wmap),
                  pl.BlockSpec((d, d), wmap)],
        out_specs=(pl.BlockSpec((bt, n, d), xmap),
                   pl.BlockSpec((bt, n, 3 * d), xmap),
                   pl.BlockSpec((bt, 1, d), xmap)),
        out_shape=(jax.ShapeDtypeStruct((bsz, n, d), ACT_DTYPE),
                   jax.ShapeDtypeStruct((bsz, n, 3 * d), ACT_DTYPE),
                   jax.ShapeDtypeStruct((bsz, 1, d), jnp.float32)),
        compiler_params=_compiler_params(("parallel",)),
    )(emb_raw, scale, shift, params['W_node'], params['W_fixed'])

    sample = decode_type == 'sampling'
    btd = _pick_decode_tile(bsz)
    grid2 = (bsz // btd, n)                       # (batch tile: parallel, step: arbitrary)
    resmap = lambda i, s: (i, 0, 0)
    wmap2 = lambda i, s: (0, 0)
    omap = lambda i, s: (i, 0)

    in_specs, inputs = [], []
    if sample:
        # Gumbel-max == categorical sampling; noise precomputed host-side so the
        # rollout kernel needs no in-kernel PRNG (and no per-step reseeding).
        u = jax.random.uniform(jax.random.PRNGKey(seed), (n, bsz, n), jnp.float32,
                               minval=1e-7, maxval=1.0)
        gumbel = -jnp.log(-jnp.log(u))
        in_specs.append(pl.BlockSpec((1, btd, n), lambda i, s: (s, i, 0)))
        inputs.append(gumbel)

    in_specs += [pl.BlockSpec((btd, n, d), resmap),
                 pl.BlockSpec((btd, n, 3 * d), resmap),
                 pl.BlockSpec((btd, 1, d), resmap),
                 pl.BlockSpec((2 * d, d), wmap2),
                 pl.BlockSpec((d, d), wmap2),
                 pl.BlockSpec((1, 2 * d), wmap2)]
    inputs += [emb, gkvl, fixed, params['W_step'], params['W_out'],
               params['W_placeholder']]

    actions, ll, ent = pl.pallas_call(
        make_rollout_kernel(sample),
        grid=grid2,
        in_specs=in_specs,
        out_specs=(pl.BlockSpec((btd, n), omap),
                   pl.BlockSpec((btd, n), omap),
                   pl.BlockSpec((btd, n), omap)),
        out_shape=(jax.ShapeDtypeStruct((bsz, n), jnp.int32),     # actions
                   jax.ShapeDtypeStruct((bsz, n), jnp.float32),   # per-step selected logp
                   jax.ShapeDtypeStruct((bsz, n), jnp.float32)),  # per-step entropy
        scratch_shapes=[pltpu.VMEM((btd, n), jnp.float32),    # visited mask
                        pltpu.VMEM((btd, d), jnp.float32),    # first-node embedding
                        pltpu.VMEM((btd, d), jnp.float32)],   # current-node embedding
        compiler_params=_compiler_params(("parallel", "arbitrary")),
    )(*inputs)
    return actions, ll, ent


def _prepare_params(params):
    # Pre-cast MXU weights once on the host (bf16 operands, f32 accumulation).
    c = lambda w: w.astype(MM_DTYPE)
    p = dict(params)
    p['W_node'] = c(params['W_node'])
    p['W_fixed'] = c(params['W_fixed'])
    p['W_step'] = c(params['W_step'])
    p['W_out'] = c(params['W_out'])
    p['layers'] = [dict(lp, Wqkv=c(lp['Wqkv']), Wo=c(lp['Wo']),
                        W1=c(lp['W1']), W2=c(lp['W2']))
                   for lp in params['layers']]
    return p


def ppo_attention_policy_forward(locs, params, phase='val', decode_type=None,
                                 return_action=False, return_entropy=False, seed=0):
    """Equivalent of PPOAttentionModelPolicy.forward on a TSP TensorDict."""
    params = _prepare_params(params)
    emb_raw, scale, shift = encode(locs, params)
    if decode_type is None:
        decode_type = {'train': 'sampling', 'val': 'greedy', 'test': 'greedy'}[phase]
    actions, ll, ent_steps = decode(emb_raw, scale, shift, params, decode_type, seed)

    # TSP reward = negative tour length (closed tour)
    ordered = jnp.take_along_axis(locs, actions[:, :, None], axis=1)        # (B, N, 2)
    diffs = ordered - jnp.roll(ordered, shift=-1, axis=1)
    reward = -jnp.sum(jnp.sqrt(jnp.sum(diffs ** 2, axis=-1)), axis=-1)      # (B,)

    out = {'reward': reward, 'log_likelihood': ll}                          # ll: (B, steps)
    if return_action:
        out['actions'] = actions
    if return_entropy:
        out['entropy'] = jnp.sum(ent_steps, axis=1)                         # (B,)
    # TODO(synk): given_actions teacher-forced re-evaluation (selected_log_p) not wired.
    return out


# ----------------------------- deterministic params --------------------------
def init_params(key):
    d, ff = EMBED_DIM, FF_HIDDEN
    keys = iter(jax.random.split(key, 64))

    def u(shape, fan):
        bound = 1.0 / math.sqrt(fan)
        return jax.random.uniform(next(keys), shape, jnp.float32, -bound, bound)

    params = {
        'init_W': u((2, d), 2),
        'init_b': u((d,), 2),
        'layers': [],
        # decoder: fused project_node_embeddings (gk|gv|lk), no biases anywhere
        'W_node': u((d, 3 * d), d),
        'W_fixed': u((d, d), d),
        'W_step': u((2 * d, d), 2 * d),
        'W_out': u((d, d), d),
        'W_placeholder': jax.random.uniform(next(keys), (1, 2 * d), jnp.float32, -1.0, 1.0),
    }
    for _ in range(NUM_LAYERS):
        params['layers'].append({
            'Wqkv': u((d, 3 * d), d),   # fused per-head Wq|Wk|Wv (heads = 16-lane chunks)
            'Wo': u((d, d), d),         # stacked per-head output projections
            'bn1_g': jnp.ones((1, d), jnp.float32),
            'bn1_b': jnp.zeros((1, d), jnp.float32),
            'W1': u((d, ff), d),
            'b1': u((1, ff), d),
            'W2': u((ff, d), ff),
            'b2': u((1, d), ff),
            'bn2_g': jnp.ones((1, d), jnp.float32),
            'bn2_b': jnp.zeros((1, d), jnp.float32),
        })
    return params


# ----------------------------- demo -----------------------------------------
if __name__ == "__main__":
    key = jax.random.PRNGKey(0)
    pkey, dkey = jax.random.split(key)
    params = init_params(pkey)

    B, N = 2, 8                                                 # batch=2, 8 TSP nodes
    locs = jax.random.uniform(dkey, (B, N, 2), jnp.float32)     # td["locs"]

    # greedy (val) rollout
    out = ppo_attention_policy_forward(
        locs, params, phase='val', return_action=True, return_entropy=True)
    out = jax.tree_util.tree_map(jax.block_until_ready, out)

    assert out['reward'].shape == (B,)
    assert out['log_likelihood'].shape == (B, N)
    assert out['actions'].shape == (B, N)
    assert out['entropy'].shape == (B,)
    # actions must form a valid tour (permutation of the N nodes)
    sorted_actions = jnp.sort(out['actions'], axis=-1)
    assert bool(jnp.all(sorted_actions ==
                        jnp.arange(N, dtype=out['actions'].dtype)[None, :]))
    assert bool(jnp.all(jnp.isfinite(out['log_likelihood'])))
    assert bool(jnp.all(jnp.isfinite(out['entropy'])))

    # sampling (train) rollout exercises the Gumbel-max categorical path
    out_s = ppo_attention_policy_forward(
        locs, params, phase='train', return_action=True, seed=1234)
    out_s = jax.tree_util.tree_map(jax.block_until_ready, out_s)
    assert out_s['actions'].shape == (B, N)
    sorted_actions_s = jnp.sort(out_s['actions'], axis=-1)
    assert bool(jnp.all(sorted_actions_s ==
                        jnp.arange(N, dtype=out_s['actions'].dtype)[None, :]))
    assert bool(jnp.all(jnp.isfinite(out_s['log_likelihood'])))

    print("KERNEL_OK")
</pallas_src>

<mosaic_0001>
module attributes {stable_mosaic.version = 11 : i64} {
  func.func @encoder_mha_kernel(%arg0: i32, %arg1: memref<2x8x128xf32, #tpu.memory_space<vmem>>, %arg2: memref<1x128xf32, #tpu.memory_space<vmem>>, %arg3: memref<1x128xf32, #tpu.memory_space<vmem>>, %arg4: memref<128x384xbf16, #tpu.memory_space<vmem>>, %arg5: memref<128x128xbf16, #tpu.memory_space<vmem>>, %arg6: memref<2x8x128xf32, #tpu.memory_space<vmem>>, %arg7: memref<1x1x128xf32, #tpu.memory_space<vmem>>, %arg8: memref<1x1x128xf32, #tpu.memory_space<vmem>>) attributes {dimension_semantics = [#tpu.dimension_semantics<parallel>], iteration_bounds = array<i64: 1>, scalar_prefetch = 0 : i64, scratch_operands = 0 : i64, tpu.core_type = #tpu.core_type<tc>, window_params = [{transform_indices = @transform_0, window_bounds = array<i64: 2, 8, 128>}, {pipeline_mode = #tpu.pipeline_mode<synchronous>, transform_indices = @transform_1, window_bounds = array<i64: 1, 128>}, {pipeline_mode = #tpu.pipeline_mode<synchronous>, transform_indices = @transform_2, window_bounds = array<i64: 1, 128>}, {pipeline_mode = #tpu.pipeline_mode<synchronous>, transform_indices = @transform_3, window_bounds = array<i64: 128, 384>}, {pipeline_mode = #tpu.pipeline_mode<synchronous>, transform_indices = @transform_4, window_bounds = array<i64: 128, 128>}, {transform_indices = @transform_5, window_bounds = array<i64: 2, 8, 128>}, {transform_indices = @transform_6, window_bounds = array<i64: 1, 1, 128>}, {transform_indices = @transform_7, window_bounds = array<i64: 1, 1, 128>}]} {
    %c0 = arith.constant 0 : index
    %c0_0 = arith.constant 0 : index
    %c0_1 = arith.constant 0 : index
    %0 = vector.load %arg1[%c0, %c0_0, %c0_1] : memref<2x8x128xf32, #tpu.memory_space<vmem>>, vector<2x8x128xf32>
    %c0_2 = arith.constant 0 : index
    %c0_3 = arith.constant 0 : index
    %1 = vector.load %arg2[%c0_2, %c0_3] : memref<1x128xf32, #tpu.memory_space<vmem>>, vector<1x128xf32>
    %2 = vector.shape_cast %1 : vector<1x128xf32> to vector<1x1x128xf32>
    %3 = vector.broadcast %2 : vector<1x1x128xf32> to vector<2x8x128xf32>
    %4 = arith.mulf %0, %3 : vector<2x8x128xf32>
    %c0_4 = arith.constant 0 : index
    %c0_5 = arith.constant 0 : index
    %5 = vector.load %arg3[%c0_4, %c0_5] : memref<1x128xf32, #tpu.memory_space<vmem>>, vector<1x128xf32>
    %6 = vector.shape_cast %5 : vector<1x128xf32> to vector<1x1x128xf32>
    %7 = vector.broadcast %6 : vector<1x1x128xf32> to vector<2x8x128xf32>
    %8 = arith.addf %4, %7 : vector<2x8x128xf32>
    %9 = vector.shape_cast %8 : vector<2x8x128xf32> to vector<16x128xf32>
    %c0_6 = arith.constant 0 : index
    %c0_7 = arith.constant 0 : index
    %10 = vector.load %arg4[%c0_6, %c0_7] : memref<128x384xbf16, #tpu.memory_space<vmem>>, vector<128x384xbf16>
    %11 = arith.truncf %9 : vector<16x128xf32> to vector<16x128xbf16>
    %cst = arith.constant dense<0.000000e+00> : vector<16x384xf32>
    %12 = tpu.matmul %11, %10, %cst {dimension_numbers = #tpu.dot_dimension_numbers<[1], [0], [0], [1], [0, 0, 1, 1], [], []>} : vector<16x128xbf16>, vector<128x384xbf16>, vector<16x384xf32> -> vector<16x384xf32>
    %13 = vector.extract_strided_slice %12 {offsets = [0, 0], sizes = [16, 128], strides = [1, 1]} : vector<16x384xf32> to vector<16x128xf32>
    %14 = vector.shape_cast %13 : vector<16x128xf32> to vector<2x8x128xf32>
    %15 = vector.extract_strided_slice %12 {offsets = [0, 128], sizes = [16, 128], strides = [1, 1]} : vector<16x384xf32> to vector<16x128xf32>
    %16 = vector.shape_cast %15 : vector<16x128xf32> to vector<2x8x128xf32>
    %17 = vector.extract_strided_slice %12 {offsets = [0, 256], sizes = [16, 128], strides = [1, 1]} : vector<16x384xf32> to vector<16x128xf32>
    %18 = vector.shape_cast %17 : vector<16x128xf32> to vector<2x8x128xf32>
    %19 = vector.extract_strided_slice %14 {offsets = [0, 0, 0], sizes = [2, 8, 16], strides = [1, 1, 1]} : vector<2x8x128xf32> to vector<2x8x16xf32>
    %20 = vector.extract_strided_slice %16 {offsets = [0, 0, 0], sizes = [2, 8, 16], strides = [1, 1, 1]} : vector<2x8x128xf32> to vector<2x8x16xf32>
    %21 = arith.truncf %19 : vector<2x8x16xf32> to vector<2x8x16xbf16>
    %22 = arith.truncf %20 : vector<2x8x16xf32> to vector<2x8x16xbf16>
    "tpu.trace_start"() <{level = 10 : i32, message = "bnd,bkd->bnk"}> : () -> ()
    %cst_8 = arith.constant dense<0.000000e+00> : vector<2x8x8xf32>
    %23 = tpu.matmul %21, %22, %cst_8 {dimension_numbers = #tpu.dot_dimension_numbers<[2], [2], [1], [1], [0, 0, 0, 1, 1, 1], [0], [0]>} : vector<2x8x16xbf16>, vector<2x8x16xbf16>, vector<2x8x8xf32> -> vector<2x8x8xf32>
    "tpu.trace_stop"() : () -> ()
    %cst_9 = arith.constant 2.500000e-01 : f32
    %24 = vector.broadcast %cst_9 : f32 to vector<2x8x8xf32>
    %25 = arith.mulf %23, %24 : vector<2x8x8xf32>
    %cst_10 = arith.constant dense<0xFF800000> : vector<2x8xf32>
    %26 = vector.multi_reduction <maximumf>, %25, %cst_10 [2] : vector<2x8x8xf32> to vector<2x8xf32>
    %27 = vector.shape_cast %26 : vector<2x8xf32> to vector<2x8x1xf32>
    %28 = vector.broadcast %27 : vector<2x8x1xf32> to vector<2x8x8xf32>
    %29 = arith.subf %25, %28 : vector<2x8x8xf32>
    %30 = math.exp %29 : vector<2x8x8xf32>
    %cst_11 = arith.constant dense<0.000000e+00> : vector<2x8xf32>
    %31 = vector.multi_reduction <add>, %30, %cst_11 [2] : vector<2x8x8xf32> to vector<2x8xf32>
    %32 = vector.shape_cast %31 : vector<2x8xf32> to vector<2x8x1xf32>
    %33 = tpu.reciprocal %32 {approx = true} : vector<2x8x1xf32> -> vector<2x8x1xf32>
    %34 = vector.broadcast %33 : vector<2x8x1xf32> to vector<2x8x8xf32>
    %35 = arith.mulf %30, %34 : vector<2x8x8xf32>
    %36 = vector.extract_strided_slice %18 {offsets = [0, 0, 0], sizes = [2, 8, 16], strides = [1, 1, 1]} : vector<2x8x128xf32> to vector<2x8x16xf32>
    %37 = arith.truncf %35 : vector<2x8x8xf32> to vector<2x8x8xbf16>
    %38 = arith.truncf %36 : vector<2x8x16xf32> to vector<2x8x16xbf16>
    "tpu.trace_start"() <{level = 10 : i32, message = "bnk,bkd->bnd"}> : () -> ()
    %cst_12 = arith.constant dense<0.000000e+00> : vector<2x8x16xf32>
    %39 = tpu.matmul %37, %38, %cst_12 {dimension_numbers = #tpu.dot_dimension_numbers<[2], [1], [1], [2], [0, 0, 0, 1, 1, 2], [0], [0]>} : vector<2x8x8xbf16>, vector<2x8x16xbf16>, vector<2x8x16xf32> -> vector<2x8x16xf32>
    "tpu.trace_stop"() : () -> ()
    %40 = vector.extract_strided_slice %14 {offsets = [0, 0, 16], sizes = [2, 8, 16], strides = [1, 1, 1]} : vector<2x8x128xf32> to vector<2x8x16xf32>
    %41 = vector.extract_strided_slice %16 {offsets = [0, 0, 16], sizes = [2, 8, 16], strides = [1, 1, 1]} : vector<2x8x128xf32> to vector<2x8x16xf32>
    %42 = arith.truncf %40 : vector<2x8x16xf32> to vector<2x8x16xbf16>
    %43 = arith.truncf %41 : vector<2x8x16xf32> to vector<2x8x16xbf16>
    "tpu.trace_start"() <{level = 10 : i32, message = "bnd,bkd->bnk"}> : () -> ()
    %cst_13 = arith.constant dense<0.000000e+00> : vector<2x8x8xf32>
    %44 = tpu.matmul %42, %43, %cst_13 {dimension_numbers = #tpu.dot_dimension_numbers<[2], [2], [1], [1], [0, 0, 0, 1, 1, 1], [0], [0]>} : vector<2x8x16xbf16>, vector<2x8x16xbf16>, vector<2x8x8xf32> -> vector<2x8x8xf32>
    "tpu.trace_stop"() : () -> ()
    %cst_14 = arith.constant 2.500000e-01 : f32
    %45 = vector.broadcast %cst_14 : f32 to vector<2x8x8xf32>
    %46 = arith.mulf %44, %45 : vector<2x8x8xf32>
    %cst_15 = arith.constant dense<0xFF800000> : vector<2x8xf32>
    %47 = vector.multi_reduction <maximumf>, %46, %cst_15 [2] : vector<2x8x8xf32> to vector<2x8xf32>
    %48 = vector.shape_cast %47 : vector<2x8xf32> to vector<2x8x1xf32>
    %49 = vector.broadcast %48 : vector<2x8x1xf32> to vector<2x8x8xf32>
    %50 = arith.subf %46, %49 : vector<2x8x8xf32>
    %51 = math.exp %50 : vector<2x8x8xf32>
    %cst_16 = arith.constant dense<0.000000e+00> : vector<2x8xf32>
    %52 = vector.multi_reduction <add>, %51, %cst_16 [2] : vector<2x8x8xf32> to vector<2x8xf32>
    %53 = vector.shape_cast %52 : vector<2x8xf32> to vector<2x8x1xf32>
    %54 = tpu.reciprocal %53 {approx = true} : vector<2x8x1xf32> -> vector<2x8x1xf32>
    %55 = vector.broadcast %54 : vector<2x8x1xf32> to vector<2x8x8xf32>
    %56 = arith.mulf %51, %55 : vector<2x8x8xf32>
    %57 = vector.extract_strided_slice %18 {offsets = [0, 0, 16], sizes = [2, 8, 16], strides = [1, 1, 1]} : vector<2x8x128xf32> to vector<2x8x16xf32>
    %58 = arith.truncf %56 : vector<2x8x8xf32> to vector<2x8x8xbf16>
    %59 = arith.truncf %57 : vector<2x8x16xf32> to vector<2x8x16xbf16>
    "tpu.trace_start"() <{level = 10 : i32, message = "bnk,bkd->bnd"}> : () -> ()
    %cst_17 = arith.constant dense<0.000000e+00> : vector<2x8x16xf32>
    %60 = tpu.matmul %58, %59, %cst_17 {dimension_numbers = #tpu.dot_dimension_numbers<[2], [1], [1], [2], [0, 0, 0, 1, 1, 2], [0], [0]>} : vector<2x8x8xbf16>, vector<2x8x16xbf16>, vector<2x8x16xf32> -> vector<2x8x16xf32>
    "tpu.trace_stop"() : () -> ()
    %61 = vector.extract_strided_slice %14 {offsets = [0, 0, 32], sizes = [2, 8, 16], strides = [1, 1, 1]} : vector<2x8x128xf32> to vector<2x8x16xf32>
    %62 = vector.extract_strided_slice %16 {offsets = [0, 0, 32], sizes = [2, 8, 16], strides = [1, 1, 1]} : vector<2x8x128xf32> to vector<2x8x16xf32>
    %63 = arith.truncf %61 : vector<2x8x16xf32> to vector<2x8x16xbf16>
    %64 = arith.truncf %62 : vector<2x8x16xf32> to vector<2x8x16xbf16>
    "tpu.trace_start"() <{level = 10 : i32, message = "bnd,bkd->bnk"}> : () -> ()
    %cst_18 = arith.constant dense<0.000000e+00> : vector<2x8x8xf32>
    %65 = tpu.matmul %63, %64, %cst_18 {dimension_numbers = #tpu.dot_dimension_numbers<[2], [2], [1], [1], [0, 0, 0, 1, 1, 1], [0], [0]>} : vector<2x8x16xbf16>, vector<2x8x16xbf16>, vector<2x8x8xf32> -> vector<2x8x8xf32>
    "tpu.trace_stop"() : () -> ()
    %cst_19 = arith.constant 2.500000e-01 : f32
    %66 = vector.broadcast %cst_19 : f32 to vector<2x8x8xf32>
    %67 = arith.mulf %65, %66 : vector<2x8x8xf32>
    %cst_20 = arith.constant dense<0xFF800000> : vector<2x8xf32>
    %68 = vector.multi_reduction <maximumf>, %67, %cst_20 [2] : vector<2x8x8xf32> to vector<2x8xf32>
    %69 = vector.shape_cast %68 : vector<2x8xf32> to vector<2x8x1xf32>
    %70 = vector.broadcast %69 : vector<2x8x1xf32> to vector<2x8x8xf32>
    %71 = arith.subf %67, %70 : vector<2x8x8xf32>
    %72 = math.exp %71 : vector<2x8x8xf32>
    %cst_21 = arith.constant dense<0.000000e+00> : vector<2x8xf32>
    %73 = vector.multi_reduction <add>, %72, %cst_21 [2] : vector<2x8x8xf32> to vector<2x8xf32>
    %74 = vector.shape_cast %73 : vector<2x8xf32> to vector<2x8x1xf32>
    %75 = tpu.reciprocal %74 {approx = true} : vector<2x8x1xf32> -> vector<2x8x1xf32>
    %76 = vector.broadcast %75 : vector<2x8x1xf32> to vector<2x8x8xf32>
    %77 = arith.mulf %72, %76 : vector<2x8x8xf32>
    %78 = vector.extract_strided_slice %18 {offsets = [0, 0, 32], sizes = [2, 8, 16], strides = [1, 1, 1]} : vector<2x8x128xf32> to vector<2x8x16xf32>
    %79 = arith.truncf %77 : vector<2x8x8xf32> to vector<2x8x8xbf16>
    %80 = arith.truncf %78 : vector<2x8x16xf32> to vector<2x8x16xbf16>
    "tpu.trace_start"() <{level = 10 : i32, message = "bnk,bkd->bnd"}> : () -> ()
    %cst_22 = arith.constant dense<0.000000e+00> : vector<2x8x16xf32>
    %81 = tpu.matmul %79, %80, %cst_22 {dimension_numbers = #tpu.dot_dimension_numbers<[2], [1], [1], [2], [0, 0, 0, 1, 1, 2], [0], [0]>} : vector<2x8x8xbf16>, vector<2x8x16xbf16>, vector<2x8x16xf32> -> vector<2x8x16xf32>
    "tpu.trace_stop"() : () -> ()
    %82 = vector.extract_strided_slice %14 {offsets = [0, 0, 48], sizes = [2, 8, 16], strides = [1, 1, 1]} : vector<2x8x128xf32> to vector<2x8x16xf32>
    %83 = vector.extract_strided_slice %16 {offsets = [0, 0, 48], sizes = [2, 8, 16], strides = [1, 1, 1]} : vector<2x8x128xf32> to vector<2x8x16xf32>
    %84 = arith.truncf %82 : vector<2x8x16xf32> to vector<2x8x16xbf16>
    %85 = arith.truncf %83 : vector<2x8x16xf32> to vector<2x8x16xbf16>
    "tpu.trace_start"() <{level = 10 : i32, message = "bnd,bkd->bnk"}> : () -> ()
    %cst_23 = arith.constant dense<0.000000e+00> : vector<2x8x8xf32>
    %86 = tpu.matmul %84, %85, %cst_23 {dimension_numbers = #tpu.dot_dimension_numbers<[2], [2], [1], [1], [0, 0, 0, 1, 1, 1], [0], [0]>} : vector<2x8x16xbf16>, vector<2x8x16xbf16>, vector<2x8x8xf32> -> vector<2x8x8xf32>
    "tpu.trace_stop"() : () -> ()
    %cst_24 = arith.constant 2.500000e-01 : f32
    %87 = vector.broadcast %cst_24 : f32 to vector<2x8x8xf32>
    %88 = arith.mulf %86, %87 : vector<2x8x8xf32>
    %cst_25 = arith.constant dense<0xFF800000> : vector<2x8xf32>
    %89 = vector.multi_reduction <maximumf>, %88, %cst_25 [2] : vector<2x8x8xf32> to vector<2x8xf32>
    %90 = vector.shape_cast %89 : vector<2x8xf32> to vector<2x8x1xf32>
    %91 = vector.broadcast %90 : vector<2x8x1xf32> to vector<2x8x8xf32>
    %92 = arith.subf %88, %91 : vector<2x8x8xf32>
    %93 = math.exp %92 : vector<2x8x8xf32>
    %cst_26 = arith.constant dense<0.000000e+00> : vector<2x8xf32>
    %94 = vector.multi_reduction <add>, %93, %cst_26 [2] : vector<2x8x8xf32> to vector<2x8xf32>
    %95 = vector.shape_cast %94 : vector<2x8xf32> to vector<2x8x1xf32>
    %96 = tpu.reciprocal %95 {approx = true} : vector<2x8x1xf32> -> vector<2x8x1xf32>
    %97 = vector.broadcast %96 : vector<2x8x1xf32> to vector<2x8x8xf32>
    %98 = arith.mulf %93, %97 : vector<2x8x8xf32>
    %99 = vector.extract_strided_slice %18 {offsets = [0, 0, 48], sizes = [2, 8, 16], strides = [1, 1, 1]} : vector<2x8x128xf32> to vector<2x8x16xf32>
    %100 = arith.truncf %98 : vector<2x8x8xf32> to vector<2x8x8xbf16>
    %101 = arith.truncf %99 : vector<2x8x16xf32> to vector<2x8x16xbf16>
    "tpu.trace_start"() <{level = 10 : i32, message = "bnk,bkd->bnd"}> : () -> ()
    %cst_27 = arith.constant dense<0.000000e+00> : vector<2x8x16xf32>
    %102 = tpu.matmul %100, %101, %cst_27 {dimension_numbers = #tpu.dot_dimension_numbers<[2], [1], [1], [2], [0, 0, 0, 1, 1, 2], [0], [0]>} : vector<2x8x8xbf16>, vector<2x8x16xbf16>, vector<2x8x16xf32> -> vector<2x8x16xf32>
    "tpu.trace_stop"() : () -> ()
    %103 = vector.extract_strided_slice %14 {offsets = [0, 0, 64], sizes = [2, 8, 16], strides = [1, 1, 1]} : vector<2x8x128xf32> to vector<2x8x16xf32>
    %104 = vector.extract_strided_slice %16 {offsets = [0, 0, 64], sizes = [2, 8, 16], strides = [1, 1, 1]} : vector<2x8x128xf32> to vector<2x8x16xf32>
    %105 = arith.truncf %103 : vector<2x8x16xf32> to vector<2x8x16xbf16>
    %106 = arith.truncf %104 : vector<2x8x16xf32> to vector<2x8x16xbf16>
    "tpu.trace_start"() <{level = 10 : i32, message = "bnd,bkd->bnk"}> : () -> ()
    %cst_28 = arith.constant dense<0.000000e+00> : vector<2x8x8xf32>
    %107 = tpu.matmul %105, %106, %cst_28 {dimension_numbers = #tpu.dot_dimension_numbers<[2], [2], [1], [1], [0, 0, 0, 1, 1, 1], [0], [0]>} : vector<2x8x16xbf16>, vector<2x8x16xbf16>, vector<2x8x8xf32> -> vector<2x8x8xf32>
    "tpu.trace_stop"() : () -> ()
    %cst_29 = arith.constant 2.500000e-01 : f32
    %108 = vector.broadcast %cst_29 : f32 to vector<2x8x8xf32>
    %109 = arith.mulf %107, %108 : vector<2x8x8xf32>
    %cst_30 = arith.constant dense<0xFF800000> : vector<2x8xf32>
    %110 = vector.multi_reduction <maximumf>, %109, %cst_30 [2] : vector<2x8x8xf32> to vector<2x8xf32>
    %111 = vector.shape_cast %110 : vector<2x8xf32> to vector<2x8x1xf32>
    %112 = vector.broadcast %111 : vector<2x8x1xf32> to vector<2x8x8xf32>
    %113 = arith.subf %109, %112 : vector<2x8x8xf32>
    %114 = math.exp %113 : vector<2x8x8xf32>
    %cst_31 = arith.constant dense<0.000000e+00> : vector<2x8xf32>
    %115 = vector.multi_reduction <add>, %114, %cst_31 [2] : vector<2x8x8xf32> to vector<2x8xf32>
    %116 = vector.shape_cast %115 : vector<2x8xf32> to vector<2x8x1xf32>
    %117 = tpu.reciprocal %116 {approx = true} : vector<2x8x1xf32> -> vector<2x8x1xf32>
    %118 = vector.broadcast %117 : vector<2x8x1xf32> to vector<2x8x8xf32>
    %119 = arith.mulf %114, %118 : vector<2x8x8xf32>
    %120 = vector.extract_strided_slice %18 {offsets = [0, 0, 64], sizes = [2, 8, 16], strides = [1, 1, 1]} : vector<2x8x128xf32> to vector<2x8x16xf32>
    %121 = arith.truncf %119 : vector<2x8x8xf32> to vector<2x8x8xbf16>
    %122 = arith.truncf %120 : vector<2x8x16xf32> to vector<2x8x16xbf16>
    "tpu.trace_start"() <{level = 10 : i32, message = "bnk,bkd->bnd"}> : () -> ()
    %cst_32 = arith.constant dense<0.000000e+00> : vector<2x8x16xf32>
    %123 = tpu.matmul %121, %122, %cst_32 {dimension_numbers = #tpu.dot_dimension_numbers<[2], [1], [1], [2], [0, 0, 0, 1, 1, 2], [0], [0]>} : vector<2x8x8xbf16>, vector<2x8x16xbf16>, vector<2x8x16xf32> -> vector<2x8x16xf32>
    "tpu.trace_stop"() : () -> ()
    %124 = vector.extract_strided_slice %14 {offsets = [0, 0, 80], sizes = [2, 8, 16], strides = [1, 1, 1]} : vector<2x8x128xf32> to vector<2x8x16xf32>
    %125 = vector.extract_strided_slice %16 {offsets = [0, 0, 80], sizes = [2, 8, 16], strides = [1, 1, 1]} : vector<2x8x128xf32> to vector<2x8x16xf32>
    %126 = arith.truncf %124 : vector<2x8x16xf32> to vector<2x8x16xbf16>
    %127 = arith.truncf %125 : vector<2x8x16xf32> to vector<2x8x16xbf16>
    "tpu.trace_start"() <{level = 10 : i32, message = "bnd,bkd->bnk"}> : () -> ()
    %cst_33 = arith.constant dense<0.000000e+00> : vector<2x8x8xf32>
    %128 = tpu.matmul %126, %127, %cst_33 {dimension_numbers = #tpu.dot_dimension_numbers<[2], [2], [1], [1], [0, 0, 0, 1, 1, 1], [0], [0]>} : vector<2x8x16xbf16>, vector<2x8x16xbf16>, vector<2x8x8xf32> -> vector<2x8x8xf32>
    "tpu.trace_stop"() : () -> ()
    %cst_34 = arith.constant 2.500000e-01 : f32
    %129 = vector.broadcast %cst_34 : f32 to vector<2x8x8xf32>
    %130 = arith.mulf %128, %129 : vector<2x8x8xf32>
    %cst_35 = arith.constant dense<0xFF800000> : vector<2x8xf32>
    %131 = vector.multi_reduction <maximumf>, %130, %cst_35 [2] : vector<2x8x8xf32> to vector<2x8xf32>
    %132 = vector.shape_cast %131 : vector<2x8xf32> to vector<2x8x1xf32>
    %133 = vector.broadcast %132 : vector<2x8x1xf32> to vector<2x8x8xf32>
    %134 = arith.subf %130, %133 : vector<2x8x8xf32>
    %135 = math.exp %134 : vector<2x8x8xf32>
    %cst_36 = arith.constant dense<0.000000e+00> : vector<2x8xf32>
    %136 = vector.multi_reduction <add>, %135, %cst_36 [2] : vector<2x8x8xf32> to vector<2x8xf32>
    %137 = vector.shape_cast %136 : vector<2x8xf32> to vector<2x8x1xf32>
    %138 = tpu.reciprocal %137 {approx = true} : vector<2x8x1xf32> -> vector<2x8x1xf32>
    %139 = vector.broadcast %138 : vector<2x8x1xf32> to vector<2x8x8xf32>
    %140 = arith.mulf %135, %139 : vector<2x8x8xf32>
    %141 = vector.extract_strided_slice %18 {offsets = [0, 0, 80], sizes = [2, 8, 16], strides = [1, 1, 1]} : vector<2x8x128xf32> to vector<2x8x16xf32>
    %142 = arith.truncf %140 : vector<2x8x8xf32> to vector<2x8x8xbf16>
    %143 = arith.truncf %141 : vector<2x8x16xf32> to vector<2x8x16xbf16>
    "tpu.trace_start"() <{level = 10 : i32, message = "bnk,bkd->bnd"}> : () -> ()
    %cst_37 = arith.constant dense<0.000000e+00> : vector<2x8x16xf32>
    %144 = tpu.matmul %142, %143, %cst_37 {dimension_numbers = #tpu.dot_dimension_numbers<[2], [1], [1], [2], [0, 0, 0, 1, 1, 2], [0], [0]>} : vector<2x8x8xbf16>, vector<2x8x16xbf16>, vector<2x8x16xf32> -> vector<2x8x16xf32>
    "tpu.trace_stop"() : () -> ()
    %145 = vector.extract_strided_slice %14 {offsets = [0, 0, 96], sizes = [2, 8, 16], strides = [1, 1, 1]} : vector<2x8x128xf32> to vector<2x8x16xf32>
    %146 = vector.extract_strided_slice %16 {offsets = [0, 0, 96], sizes = [2, 8, 16], strides = [1, 1, 1]} : vector<2x8x128xf32> to vector<2x8x16xf32>
    %147 = arith.truncf %145 : vector<2x8x16xf32> to vector<2x8x16xbf16>
    %148 = arith.truncf %146 : vector<2x8x16xf32> to vector<2x8x16xbf16>
    "tpu.trace_start"() <{level = 10 : i32, message = "bnd,bkd->bnk"}> : () -> ()
    %cst_38 = arith.constant dense<0.000000e+00> : vector<2x8x8xf32>
    %149 = tpu.matmul %147, %148, %cst_38 {dimension_numbers = #tpu.dot_dimension_numbers<[2], [2], [1], [1], [0, 0, 0, 1, 1, 1], [0], [0]>} : vector<2x8x16xbf16>, vector<2x8x16xbf16>, vector<2x8x8xf32> -> vector<2x8x8xf32>
    "tpu.trace_stop"() : () -> ()
    %cst_39 = arith.constant 2.500000e-01 : f32
    %150 = vector.broadcast %cst_39 : f32 to vector<2x8x8xf32>
    %151 = arith.mulf %149, %150 : vector<2x8x8xf32>
    %cst_40 = arith.constant dense<0xFF800000> : vector<2x8xf32>
    %152 = vector.multi_reduction <maximumf>, %151, %cst_40 [2] : vector<2x8x8xf32> to vector<2x8xf32>
    %153 = vector.shape_cast %152 : vector<2x8xf32> to vector<2x8x1xf32>
    %154 = vector.broadcast %153 : vector<2x8x1xf32> to vector<2x8x8xf32>
    %155 = arith.subf %151, %154 : vector<2x8x8xf32>
    %156 = math.exp %155 : vector<2x8x8xf32>
    %cst_41 = arith.constant dense<0.000000e+00> : vector<2x8xf32>
    %157 = vector.multi_reduction <add>, %156, %cst_41 [2] : vector<2x8x8xf32> to vector<2x8xf32>
    %158 = vector.shape_cast %157 : vector<2x8xf32> to vector<2x8x1xf32>
    %159 = tpu.reciprocal %158 {approx = true} : vector<2x8x1xf32> -> vector<2x8x1xf32>
    %160 = vector.broadcast %159 : vector<2x8x1xf32> to vector<2x8x8xf32>
    %161 = arith.mulf %156, %160 : vector<2x8x8xf32>
    %162 = vector.extract_strided_slice %18 {offsets = [0, 0, 96], sizes = [2, 8, 16], strides = [1, 1, 1]} : vector<2x8x128xf32> to vector<2x8x16xf32>
    %163 = arith.truncf %161 : vector<2x8x8xf32> to vector<2x8x8xbf16>
    %164 = arith.truncf %162 : vector<2x8x16xf32> to vector<2x8x16xbf16>
    "tpu.trace_start"() <{level = 10 : i32, message = "bnk,bkd->bnd"}> : () -> ()
    %cst_42 = arith.constant dense<0.000000e+00> : vector<2x8x16xf32>
    %165 = tpu.matmul %163, %164, %cst_42 {dimension_numbers = #tpu.dot_dimension_numbers<[2], [1], [1], [2], [0, 0, 0, 1, 1, 2], [0], [0]>} : vector<2x8x8xbf16>, vector<2x8x16xbf16>, vector<2x8x16xf32> -> vector<2x8x16xf32>
    "tpu.trace_stop"() : () -> ()
    %166 = vector.extract_strided_slice %14 {offsets = [0, 0, 112], sizes = [2, 8, 16], strides = [1, 1, 1]} : vector<2x8x128xf32> to vector<2x8x16xf32>
    %167 = vector.extract_strided_slice %16 {offsets = [0, 0, 112], sizes = [2, 8, 16], strides = [1, 1, 1]} : vector<2x8x128xf32> to vector<2x8x16xf32>
    %168 = arith.truncf %166 : vector<2x8x16xf32> to vector<2x8x16xbf16>
    %169 = arith.truncf %167 : vector<2x8x16xf32> to vector<2x8x16xbf16>
    "tpu.trace_start"() <{level = 10 : i32, message = "bnd,bkd->bnk"}> : () -> ()
    %cst_43 = arith.constant dense<0.000000e+00> : vector<2x8x8xf32>
    %170 = tpu.matmul %168, %169, %cst_43 {dimension_numbers = #tpu.dot_dimension_numbers<[2], [2], [1], [1], [0, 0, 0, 1, 1, 1], [0], [0]>} : vector<2x8x16xbf16>, vector<2x8x16xbf16>, vector<2x8x8xf32> -> vector<2x8x8xf32>
    "tpu.trace_stop"() : () -> ()
    %cst_44 = arith.constant 2.500000e-01 : f32
    %171 = vector.broadcast %cst_44 : f32 to vector<2x8x8xf32>
    %172 = arith.mulf %170, %171 : vector<2x8x8xf32>
    %cst_45 = arith.constant dense<0xFF800000> : vector<2x8xf32>
    %173 = vector.multi_reduction <maximumf>, %172, %cst_45 [2] : vector<2x8x8xf32> to vector<2x8xf32>
    %174 = vector.shape_cast %173 : vector<2x8xf32> to vector<2x8x1xf32>
    %175 = vector.broadcast %174 : vector<2x8x1xf32> to vector<2x8x8xf32>
    %176 = arith.subf %172, %175 : vector<2x8x8xf32>
    %177 = math.exp %176 : vector<2x8x8xf32>
    %cst_46 = arith.constant dense<0.000000e+00> : vector<2x8xf32>
    %178 = vector.multi_reduction <add>, %177, %cst_46 [2] : vector<2x8x8xf32> to vector<2x8xf32>
    %179 = vector.shape_cast %178 : vector<2x8xf32> to vector<2x8x1xf32>
    %180 = tpu.reciprocal %179 {approx = true} : vector<2x8x1xf32> -> vector<2x8x1xf32>
    %181 = vector.broadcast %180 : vector<2x8x1xf32> to vector<2x8x8xf32>
    %182 = arith.mulf %177, %181 : vector<2x8x8xf32>
    %183 = vector.extract_strided_slice %18 {offsets = [0, 0, 112], sizes = [2, 8, 16], strides = [1, 1, 1]} : vector<2x8x128xf32> to vector<2x8x16xf32>
    %184 = arith.truncf %182 : vector<2x8x8xf32> to vector<2x8x8xbf16>
    %185 = arith.truncf %183 : vector<2x8x16xf32> to vector<2x8x16xbf16>
    "tpu.trace_start"() <{level = 10 : i32, message = "bnk,bkd->bnd"}> : () -> ()
    %cst_47 = arith.constant dense<0.000000e+00> : vector<2x8x16xf32>
    %186 = tpu.matmul %184, %185, %cst_47 {dimension_numbers = #tpu.dot_dimension_numbers<[2], [1], [1], [2], [0, 0, 0, 1, 1, 2], [0], [0]>} : vector<2x8x8xbf16>, vector<2x8x16xbf16>, vector<2x8x16xf32> -> vector<2x8x16xf32>
    "tpu.trace_stop"() : () -> ()
    %187 = tpu.concatenate %39, %60, %81, %102, %123, %144, %165, %186 in 2 : vector<2x8x16xf32>, vector<2x8x16xf32>, vector<2x8x16xf32>, vector<2x8x16xf32>, vector<2x8x16xf32>, vector<2x8x16xf32>, vector<2x8x16xf32>, vector<2x8x16xf32> -> vector<2x8x128xf32>
    %188 = vector.shape_cast %187 : vector<2x8x128xf32> to vector<16x128xf32>
    %c0_48 = arith.constant 0 : index
    %c0_49 = arith.constant 0 : index
    %189 = vector.load %arg5[%c0_48, %c0_49] : memref<128x128xbf16, #tpu.memory_space<vmem>>, vector<128x128xbf16>
    %190 = arith.truncf %188 : vector<16x128xf32> to vector<16x128xbf16>
    %cst_50 = arith.constant dense<0.000000e+00> : vector<16x128xf32>
    %191 = tpu.matmul %190, %189, %cst_50 {dimension_numbers = #tpu.dot_dimension_numbers<[1], [0], [0], [1], [0, 0, 1, 1], [], []>} : vector<16x128xbf16>, vector<128x128xbf16>, vector<16x128xf32> -> vector<16x128xf32>
    %192 = arith.addf %9, %191 : vector<16x128xf32>
    %193 = vector.shape_cast %192 : vector<16x128xf32> to vector<2x8x128xf32>
    %c0_51 = arith.constant 0 : index
    %c0_52 = arith.constant 0 : index
    %c0_53 = arith.constant 0 : index
    %194 = vector.load %arg6[%c0_51, %c0_52, %c0_53] : memref<2x8x128xf32, #tpu.memory_space<vmem>>, vector<2x8x128xf32>
    tpu.vector_store %arg6[%c0_51, %c0_52, %c0_53], %193 {strides = array<i32>} : memref<2x8x128xf32, #tpu.memory_space<vmem>>, vector<2x8x128xf32>,
    %cst_54 = arith.constant dense<0.000000e+00> : vector<128xf32>
    %195 = vector.multi_reduction <add>, %192, %cst_54 [0] : vector<16x128xf32> to vector<128xf32>
    %196 = vector.shape_cast %195 : vector<128xf32> to vector<1x1x128xf32>
    %c0_55 = arith.constant 0 : index
    %c0_56 = arith.constant 0 : index
    %c0_57 = arith.constant 0 : index
    %197 = vector.load %arg7[%c0_55, %c0_56, %c0_57] : memref<1x1x128xf32, #tpu.memory_space<vmem>>, vector<1x1x128xf32>
    tpu.vector_store %arg7[%c0_55, %c0_56, %c0_57], %196 {strides = array<i32>} : memref<1x1x128xf32, #tpu.memory_space<vmem>>, vector<1x1x128xf32>,
    %198 = arith.mulf %192, %192 : vector<16x128xf32>
    %cst_58 = arith.constant dense<0.000000e+00> : vector<128xf32>
    %199 = vector.multi_reduction <add>, %198, %cst_58 [0] : vector<16x128xf32> to vector<128xf32>
    %200 = vector.shape_cast %199 : vector<128xf32> to vector<1x1x128xf32>
    %c0_59 = arith.constant 0 : index
    %c0_60 = arith.constant 0 : index
    %c0_61 = arith.constant 0 : index
    %201 = vector.load %arg8[%c0_59, %c0_60, %c0_61] : memref<1x1x128xf32, #tpu.memory_space<vmem>>, vector<1x1x128xf32>
    tpu.vector_store %arg8[%c0_59, %c0_60, %c0_61], %200 {strides = array<i32>} : memref<1x1x128xf32, #tpu.memory_space<vmem>>, vector<1x1x128xf32>,
    return
  }
  func.func @transform_0(%arg0: i32) -> (i32, i32, i32) {
    %c0_i32 = arith.constant 0 : i32
    %c0_i32_0 = arith.constant 0 : i32
    %c0_i32_1 = arith.constant 0 : i32
    return %arg0, %c0_i32, %c0_i32_0 : i32, i32, i32
  }
  func.func @transform_1(%arg0: i32) -> (i32, i32) {
    %c0_i32 = arith.constant 0 : i32
    %c0_i32_0 = arith.constant 0 : i32
    %c0_i32_1 = arith.constant 0 : i32
    return %c0_i32, %c0_i32_0 : i32, i32
  }
  func.func @transform_2(%arg0: i32) -> (i32, i32) {
    %c0_i32 = arith.constant 0 : i32
    %c0_i32_0 = arith.constant 0 : i32
    %c0_i32_1 = arith.constant 0 : i32
    return %c0_i32, %c0_i32_0 : i32, i32
  }
  func.func @transform_3(%arg0: i32) -> (i32, i32) {
    %c0_i32 = arith.constant 0 : i32
    %c0_i32_0 = arith.constant 0 : i32
    %c0_i32_1 = arith.constant 0 : i32
    return %c0_i32, %c0_i32_0 : i32, i32
  }
  func.func @transform_4(%arg0: i32) -> (i32, i32) {
    %c0_i32 = arith.constant 0 : i32
    %c0_i32_0 = arith.constant 0 : i32
    %c0_i32_1 = arith.constant 0 : i32
    return %c0_i32, %c0_i32_0 : i32, i32
  }
  func.func @transform_5(%arg0: i32) -> (i32, i32, i32) {
    %c0_i32 = arith.constant 0 : i32
    %c0_i32_0 = arith.constant 0 : i32
    %c0_i32_1 = arith.constant 0 : i32
    return %arg0, %c0_i32, %c0_i32_0 : i32, i32, i32
  }
  func.func @transform_6(%arg0: i32) -> (i32, i32, i32) {
    %c0_i32 = arith.constant 0 : i32
    %c0_i32_0 = arith.constant 0 : i32
    %c0_i32_1 = arith.constant 0 : i32
    return %arg0, %c0_i32, %c0_i32_0 : i32, i32, i32
  }
  func.func @transform_7(%arg0: i32) -> (i32, i32, i32) {
    %c0_i32 = arith.constant 0 : i32
    %c0_i32_0 = arith.constant 0 : i32
    %c0_i32_1 = arith.constant 0 : i32
    return %arg0, %c0_i32, %c0_i32_0 : i32, i32, i32
  }
}

</mosaic_0001>

<llo_original>
// kernel: tpu_custom_call.1
$region0: #{tpu_custom_call.1}
  #allocation0 [shape = 'u32[]', space=smem, size = 0x4, offset = 0x4, fixed_abs, tag = 'smem constant byte address 0x4 - core index']
  #allocation1 [shape = 'u32[144,128]{1,0:T(1,128)}', space=vmem, size = 0x12000, scoped, tag = 'internal scratch']
  %s0 = inlined_call_operand.hbm [shape: f32[2,8,128], index: 0, kind: input, shape index: {}]
  %s1 = inlined_call_operand.hbm [shape: f32[1,128], index: 1, kind: input, shape index: {}]
  %s2 = inlined_call_operand.hbm [shape: f32[1,128], index: 2, kind: input, shape index: {}]
  %s3 = inlined_call_operand.hbm [shape: bf16[128,384], index: 3, kind: input, shape index: {}]
  %s4 = inlined_call_operand.hbm [shape: bf16[128,128], index: 4, kind: input, shape index: {}]
  %s5 = inlined_call_operand.hbm [shape: f32[2,8,128], index: 5, kind: output, shape index: {0}]
  %s6 = inlined_call_operand.hbm [shape: f32[1,1,128], index: 6, kind: output, shape index: {1}]
  %s7 = inlined_call_operand.hbm [shape: f32[1,1,128], index: 7, kind: output, shape index: {2}]
  %8 = xla_tuple %s5, %s6, %s7
  %s9 = sld [smem:[#allocation0]]
  $region66: #{tpu_custom_call.1} parent=0
    _
  %s11 = ssub.s32 1, %s9
  %s12 = scalar_select 0, %s11, %s9
  $region1: #{tpu_custom_call.1} parent=0
    #allocation2 [shape = 'u8[8192]{0}', space=vmem, size = 0x2000, scoped, tag = 'input window, operand 0, single buffered']
    #allocation3 [shape = 's32[1]{0}', space=sflag, size = 0x4, scoped, tag = 'scoped memory for tpu_custom_call.1']
    #allocation4 [shape = 's32[1]{0}', space=sflag, size = 0x4, scoped, tag = 'scoped memory for tpu_custom_call.1']
    #allocation5 [shape = 'u8[512]{0}', space=vmem, size = 0x400, scoped, tag = 'input window, operand 1, single buffered']
    #allocation6 [shape = 's32[1]{0}', space=sflag, size = 0x4, scoped, tag = 'scoped memory for tpu_custom_call.1']
    #allocation7 [shape = 'u8[512]{0}', space=vmem, size = 0x400, scoped, tag = 'input window, operand 2, single buffered']
    #allocation8 [shape = 'u8[98304]{0}', space=vmem, size = 0x18000, scoped, tag = 'input window, operand 3, single buffered']
    #allocation9 [shape = 's32[1]{0}', space=sflag, size = 0x4, scoped, tag = 'scoped memory for tpu_custom_call.1']
    #allocation10 [shape = 'u8[32768]{0}', space=vmem, size = 0x8000, scoped, tag = 'input window, operand 4, single buffered']
    #allocation11 [shape = 'u8[8192]{0}', space=vmem, size = 0x2000, scoped, tag = 'output window, operand 0, single buffered']
    #allocation12 [shape = 'u8[512]{0}', space=vmem, size = 0x400, scoped, tag = 'output window, operand 1, single buffered']
    #allocation13 [shape = 's32[1]{0}', space=sflag, size = 0x4, scoped, tag = 'scoped memory for tpu_custom_call.1']
    #allocation14 [shape = 'u8[512]{0}', space=vmem, size = 0x400, scoped, tag = 'output window, operand 2, single buffered']
    %13 = vsyncpa [#allocation3], 0
    %14 = vsyncpa [#allocation6], 0
    %15 = vsyncpa [#allocation9], 0
    %16 = vsyncpa [#allocation4], 0
    %17 = vsyncpa [#allocation13], 0
    // Predicated region
    $region2: #{tpu_custom_call.1} parent=1 // pred_check
      _
    $region3: #{tpu_custom_call.1} parent=1 // pred_check_branch
      %19 = sbr.rel (0) target = $region5
    $region4: #{tpu_custom_call.1} parent=1 // pred_region
      %s21 = ssub.s32 256, 256
      %22 = vsyncadd [#allocation3], %s21
      %s23 = sshll.u32 [#allocation2], 4
      %s24 = int_to_ptr.vmem [resolvable:$true] %s23
      %29 = dma.hbm_to_vmem [thread:$0]  %s0, 256, %s24, [#allocation3], 128, 128, 8
    $region5: #{tpu_custom_call.1} parent=1 // pred_fallthru
      _
    // Predicated region
    $region6: #{tpu_custom_call.1} parent=1 // pred_check
      _
    $region7: #{tpu_custom_call.1} parent=1 // pred_check_branch
      %31 = sbr.rel (0) target = $region9
    $region8: #{tpu_custom_call.1} parent=1 // pred_region
      %s33 = ssub.s32 16, 16
      %34 = vsyncadd [#allocation6], %s33
      %s36 = sshll.u32 [#allocation5], 4
      %s37 = int_to_ptr.vmem [resolvable:$true] %s36
      %39 = dma.hbm_to_vmem [thread:$0]  %s1, 16, %s37, [#allocation6]
    $region9: #{tpu_custom_call.1} parent=1 // pred_fallthru
      _
    // Predicated region
    $region10: #{tpu_custom_call.1} parent=1 // pred_check
      _
    $region11: #{tpu_custom_call.1} parent=1 // pred_check_branch
      %41 = sbr.rel (0) target = $region13
    $region12: #{tpu_custom_call.1} parent=1 // pred_region
      %s43 = ssub.s32 16, 16
      %44 = vsyncadd [#allocation6], %s43
      %s46 = sshll.u32 [#allocation7], 4
      %s47 = int_to_ptr.vmem [resolvable:$true] %s46
      %49 = dma.hbm_to_vmem [thread:$0]  %s2, 16, %s47, [#allocation6]
    $region13: #{tpu_custom_call.1} parent=1 // pred_fallthru
      _
    // Predicated region
    $region14: #{tpu_custom_call.1} parent=1 // pred_check
      _
    $region15: #{tpu_custom_call.1} parent=1 // pred_check_branch
      %51 = sbr.rel (0) target = $region17
    $region16: #{tpu_custom_call.1} parent=1 // pred_region
      %s53 = ssub.s32 3072, 3072
      %54 = vsyncadd [#allocation9], %s53
      %s55 = sshll.u32 [#allocation8], 4
      %s56 = int_to_ptr.vmem [resolvable:$true] %s55
      %61 = dma.hbm_to_vmem [thread:$0]  %s3, 3072, %s56, [#allocation9], 192, 192, 12
    $region17: #{tpu_custom_call.1} parent=1 // pred_fallthru
      _
    // Predicated region
    $region18: #{tpu_custom_call.1} parent=1 // pred_check
      _
    $region19: #{tpu_custom_call.1} parent=1 // pred_check_branch
      %63 = sbr.rel (0) target = $region21
    $region20: #{tpu_custom_call.1} parent=1 // pred_region
      %s65 = ssub.s32 1024, 1024
      %66 = vsyncadd [#allocation9], %s65
      %s67 = sshll.u32 [#allocation10], 4
      %s68 = int_to_ptr.vmem [resolvable:$true] %s67
      %73 = dma.hbm_to_vmem [thread:$0]  %s4, 1024, %s68, [#allocation9], 64, 64, 4
    $region21: #{tpu_custom_call.1} parent=1 // pred_fallthru
      _
    // Predicated region
    $region22: #{tpu_custom_call.1} parent=1 // pred_check
      _
    $region23: #{tpu_custom_call.1} parent=1 // pred_check_branch
      %75 = sbr.rel (0) target = $region25
    $region24: #{tpu_custom_call.1} parent=1 // pred_region
      %76 = dma.done [#allocation3], 256
    $region25: #{tpu_custom_call.1} parent=1 // pred_fallthru
      _
    // Predicated region
    $region26: #{tpu_custom_call.1} parent=1 // pred_check
      _
    $region27: #{tpu_custom_call.1} parent=1 // pred_check_branch
      %78 = sbr.rel (0) target = $region29
    $region28: #{tpu_custom_call.1} parent=1 // pred_region
      %79 = dma.done [#allocation6], 16
    $region29: #{tpu_custom_call.1} parent=1 // pred_fallthru
      _
    // Predicated region
    $region30: #{tpu_custom_call.1} parent=1 // pred_check
      _
    $region31: #{tpu_custom_call.1} parent=1 // pred_check_branch
      %81 = sbr.rel (0) target = $region33
    $region32: #{tpu_custom_call.1} parent=1 // pred_region
      %82 = dma.done [#allocation6], 16
    $region33: #{tpu_custom_call.1} parent=1 // pred_fallthru
      _
    // Predicated region
    $region34: #{tpu_custom_call.1} parent=1 // pred_check
      _
    $region35: #{tpu_custom_call.1} parent=1 // pred_check_branch
      %84 = sbr.rel (0) target = $region37
    $region36: #{tpu_custom_call.1} parent=1 // pred_region
      %85 = dma.done [#allocation9], 3072
    $region37: #{tpu_custom_call.1} parent=1 // pred_fallthru
      _
    // Predicated region
    $region38: #{tpu_custom_call.1} parent=1 // pred_check
      _
    $region39: #{tpu_custom_call.1} parent=1 // pred_check_branch
      %87 = sbr.rel (0) target = $region41
    $region40: #{tpu_custom_call.1} parent=1 // pred_region
      %88 = dma.done [#allocation9], 1024
    $region41: #{tpu_custom_call.1} parent=1 // pred_fallthru
      _
    %v90 = vld [vmem:[#allocation2] sm:$0xff]
    %v91 = vld [vmem:[#allocation2 + $0x8] sm:$0xff]
    %v92 = vld [vmem:[#allocation5] sm:$0x1]
    %v94 = vlaneseq
    %v95 = vshrl.u32 %v94, 7
    %v96 = vsub.s32 0, %v95
    %v97 = vrot.slane %v92, %v96
    %v99 = vmul.f32 %v90, %v97
    %v100 = vmul.f32 %v91, %v97
    %v101 = vld [vmem:[#allocation7] sm:$0x1]
    %v103 = vlaneseq
    %v104 = vshrl.u32 %v103, 7
    %v105 = vsub.s32 0, %v104
    %v106 = vrot.slane %v101, %v105
    %v108 = vadd.f32 %v99, %v106
    %v109 = vadd.f32 %v100, %v106
    %v110 = vld [vmem:[#allocation8] sm:$0xff]
    %v111 = vld [vmem:[#allocation8 + $0x8] sm:$0xf]
    %v112 = vld [vmem:[#allocation8 + $0xc] sm:$0xff]
    %v113 = vld [vmem:[#allocation8 + $0x14] sm:$0xf]
    %v114 = vld [vmem:[#allocation8 + $0x18] sm:$0xff]
    %v115 = vld [vmem:[#allocation8 + $0x20] sm:$0xf]
    %v116 = vld [vmem:[#allocation8 + $0x24] sm:$0xff]
    %v117 = vld [vmem:[#allocation8 + $0x2c] sm:$0xf]
    %v118 = vld [vmem:[#allocation8 + $0x30] sm:$0xff]
    %v119 = vld [vmem:[#allocation8 + $0x38] sm:$0xf]
    %v120 = vld [vmem:[#allocation8 + $0x3c] sm:$0xff]
    %v121 = vld [vmem:[#allocation8 + $0x44] sm:$0xf]
    %v122 = vld [vmem:[#allocation8 + $0x48] sm:$0xff]
    %v123 = vld [vmem:[#allocation8 + $0x50] sm:$0xf]
    %v124 = vld [vmem:[#allocation8 + $0x54] sm:$0xff]
    %v125 = vld [vmem:[#allocation8 + $0x5c] sm:$0xf]
    %v126 = vld [vmem:[#allocation8 + $0x60] sm:$0xff]
    %v127 = vld [vmem:[#allocation8 + $0x68] sm:$0xf]
    %v128 = vld [vmem:[#allocation8 + $0x6c] sm:$0xff]
    %v129 = vld [vmem:[#allocation8 + $0x74] sm:$0xf]
    %v130 = vld [vmem:[#allocation8 + $0x78] sm:$0xff]
    %v131 = vld [vmem:[#allocation8 + $0x80] sm:$0xf]
    %v132 = vld [vmem:[#allocation8 + $0x84] sm:$0xff]
    %v133 = vld [vmem:[#allocation8 + $0x8c] sm:$0xf]
    %v134 = vld [vmem:[#allocation8 + $0x90] sm:$0xff]
    %v135 = vld [vmem:[#allocation8 + $0x98] sm:$0xf]
    %v136 = vld [vmem:[#allocation8 + $0x9c] sm:$0xff]
    %v137 = vld [vmem:[#allocation8 + $0xa4] sm:$0xf]
    %v138 = vld [vmem:[#allocation8 + $0xa8] sm:$0xff]
    %v139 = vld [vmem:[#allocation8 + $0xb0] sm:$0xf]
    %v140 = vld [vmem:[#allocation8 + $0xb4] sm:$0xff]
    %v141 = vld [vmem:[#allocation8 + $0xbc] sm:$0xf]
    %v142 = vpack.c.bf16 %v109, %v108
    %v175 = vunpack.c.l.b16 %v110
    %v176 = vunpack.c.h.b16 %v110
    %v177 = vunpack.c.l.b16 %v111
    %v178 = vunpack.c.l.b16 %v112
    %v179 = vunpack.c.h.b16 %v112
    %v180 = vunpack.c.l.b16 %v113
    %v181 = vunpack.c.l.b16 %v114
    %v182 = vunpack.c.h.b16 %v114
    %v183 = vunpack.c.l.b16 %v115
    %v184 = vunpack.c.l.b16 %v116
    %v185 = vunpack.c.h.b16 %v116
    %v186 = vunpack.c.l.b16 %v117
    %v187 = vunpack.c.l.b16 %v118
    %v188 = vunpack.c.h.b16 %v118
    %v189 = vunpack.c.l.b16 %v119
    %v190 = vunpack.c.l.b16 %v120
    %v191 = vunpack.c.h.b16 %v120
    %v192 = vunpack.c.l.b16 %v121
    %v193 = vunpack.c.l.b16 %v122
    %v194 = vunpack.c.h.b16 %v122
    %v195 = vunpack.c.l.b16 %v123
    %v196 = vunpack.c.l.b16 %v124
    %v197 = vunpack.c.h.b16 %v124
    %v198 = vunpack.c.l.b16 %v125
    %v199 = vunpack.c.l.b16 %v126
    %v200 = vunpack.c.h.b16 %v126
    %v201 = vunpack.c.l.b16 %v127
    %v202 = vunpack.c.l.b16 %v128
    %v203 = vunpack.c.h.b16 %v128
    %v204 = vunpack.c.l.b16 %v129
    %v205 = vunpack.c.l.b16 %v130
    %v206 = vunpack.c.h.b16 %v130
    %v207 = vunpack.c.l.b16 %v131
    %v208 = vunpack.c.l.b16 %v132
    %v209 = vunpack.c.h.b16 %v132
    %v210 = vunpack.c.l.b16 %v133
    %v211 = vunpack.c.l.b16 %v134
    %v212 = vunpack.c.h.b16 %v134
    %v213 = vunpack.c.l.b16 %v135
    %v214 = vunpack.c.l.b16 %v136
    %v215 = vunpack.c.h.b16 %v136
    %v216 = vunpack.c.l.b16 %v137
    %v217 = vunpack.c.l.b16 %v138
    %v218 = vunpack.c.h.b16 %v138
    %v219 = vunpack.c.l.b16 %v139
    %v220 = vunpack.c.l.b16 %v140
    %v221 = vunpack.c.h.b16 %v140
    %v222 = vunpack.c.l.b16 %v141
    %v223 = vpack.c.b16 %v178, %v175
    %v224 = vpack.c.b16 %v179, %v176
    %v225 = vpack.c.b16 %v180, %v177
    %v226 = vpack.c.b16 %v184, %v181
    %v227 = vpack.c.b16 %v185, %v182
    %v228 = vpack.c.b16 %v186, %v183
    %v229 = vpack.c.b16 %v190, %v187
    %v230 = vpack.c.b16 %v191, %v188
    %v231 = vpack.c.b16 %v192, %v189
    %v232 = vpack.c.b16 %v196, %v193
    %v233 = vpack.c.b16 %v197, %v194
    %v234 = vpack.c.b16 %v198, %v195
    %v235 = vpack.c.b16 %v202, %v199
    %v236 = vpack.c.b16 %v203, %v200
    %v237 = vpack.c.b16 %v204, %v201
    %v238 = vpack.c.b16 %v208, %v205
    %v239 = vpack.c.b16 %v209, %v206
    %v240 = vpack.c.b16 %v210, %v207
    %v241 = vpack.c.b16 %v214, %v211
    %v242 = vpack.c.b16 %v215, %v212
    %v243 = vpack.c.b16 %v216, %v213
    %v244 = vpack.c.b16 %v220, %v217
    %v245 = vpack.c.b16 %v221, %v218
    %v246 = vpack.c.b16 %v222, %v219
    %271 = vmatprep.subr.bf16.mxu0 %v224
    %272 = vmatpush1.bf16.msra.mxu0 %v223
    %273 = vmatprep.subr.bf16.mxu0 %v227
    %274 = vmatpush1.bf16.msra.mxu0 %v226
    %275 = vmatprep.subr.bf16.mxu0 %v230
    %276 = vmatpush1.bf16.msra.mxu0 %v229
    %277 = vmatprep.subr.bf16.mxu0 %v233
    %278 = vmatpush1.bf16.msra.mxu0 %v232
    %279 = vmatprep.subr.bf16.mxu0 %v236
    %280 = vmatpush1.bf16.msra.mxu0 %v235
    %281 = vmatprep.subr.bf16.mxu0 %v239
    %282 = vmatpush1.bf16.msra.mxu0 %v238
    %283 = vmatprep.subr.bf16.mxu0 %v242
    %284 = vmatpush1.bf16.msra.mxu0 %v241
    %285 = vmatprep.subr.bf16.mxu0 %v245
    %286 = vmatpush1.bf16.msra.mxu0 %v244
    %287 = vmatprep.subr.bf16.mxu0 0
    %288 = vmatpush1.bf16.msra.mxu0 0
    %289 = vmatprep.subr.bf16.mxu0 0
    %290 = vmatpush1.bf16.msra.mxu0 0
    %291 = vmatprep.subr.bf16.mxu0 0
    %292 = vmatpush1.bf16.msra.mxu0 0
    %293 = vmatprep.subr.bf16.mxu0 0
    %294 = vmatpush1.bf16.msra.mxu0 0
    %295 = vmatprep.subr.bf16.mxu0 0
    %296 = vmatpush1.bf16.msra.mxu0 0
    %297 = vmatprep.subr.bf16.mxu0 0
    %298 = vmatpush1.bf16.msra.mxu0 0
    %299 = vmatprep.subr.bf16.mxu0 0
    %300 = vmatpush1.bf16.msra.mxu0 0
    %301 = vmatprep.subr.bf16.mxu0 0
    %302 = vmatpush1.bf16.msra.mxu0 0
    %303 = vmatprep.mubr.bf16.mxu0 0
    %304 = vmatmul.mubr.bf16.gmra.mrb[0].mxu0 %v142
    %v305 = vpop.f32.mrb[0].mxu0
    %v306 = vadd.f32 0.0, %v305
    %v307 = vpop.f32.mrb[0].mxu0
    %v308 = vadd.f32 0.0, %v307
    %v309 = vpop.f32.mrb[0].mxu0
    %v310 = vadd.f32 0.0, %v309
    %v311 = vpop.f32.mrb[0].mxu0
    %v312 = vadd.f32 0.0, %v311
    %313 = vdwg.mxu0
    %314 = vmatprep.subr.bf16.mxu0 0
    %315 = vmatpush1.bf16.msra.mxu0 %v225
    %316 = vmatprep.subr.bf16.mxu0 0
    %317 = vmatpush1.bf16.msra.mxu0 %v228
    %318 = vmatprep.subr.bf16.mxu0 0
    %319 = vmatpush1.bf16.msra.mxu0 %v231
    %320 = vmatprep.subr.bf16.mxu0 0
    %321 = vmatpush1.bf16.msra.mxu0 %v234
    %322 = vmatprep.subr.bf16.mxu0 0
    %323 = vmatpush1.bf16.msra.mxu0 %v237
    %324 = vmatprep.subr.bf16.mxu0 0
    %325 = vmatpush1.bf16.msra.mxu0 %v240
    %326 = vmatprep.subr.bf16.mxu0 0
    %327 = vmatpush1.bf16.msra.mxu0 %v243
    %328 = vmatprep.subr.bf16.mxu0 0
    %329 = vmatpush1.bf16.msra.mxu0 %v246
    %330 = vmatprep.subr.bf16.mxu0 0
    %331 = vmatpush1.bf16.msra.mxu0 0
    %332 = vmatprep.subr.bf16.mxu0 0
    %333 = vmatpush1.bf16.msra.mxu0 0
    %334 = vmatprep.subr.bf16.mxu0 0
    %335 = vmatpush1.bf16.msra.mxu0 0
    %336 = vmatprep.subr.bf16.mxu0 0
    %337 = vmatpush1.bf16.msra.mxu0 0
    %338 = vmatprep.subr.bf16.mxu0 0
    %339 = vmatpush1.bf16.msra.mxu0 0
    %340 = vmatprep.subr.bf16.mxu0 0
    %341 = vmatpush1.bf16.msra.mxu0 0
    %342 = vmatprep.subr.bf16.mxu0 0
    %343 = vmatpush1.bf16.msra.mxu0 0
    %344 = vmatprep.subr.bf16.mxu0 0
    %345 = vmatpush1.bf16.msra.mxu0 0
    %346 = vmatprep.mubr.bf16.mxu0 0
    %347 = vmatmul.mubr.bf16.gmra.mrb[0].mxu0 %v142
    %v348 = vpop.f32.mrb[0].mxu0
    %v349 = vadd.f32 0.0, %v348
    %v350 = vpop.f32.mrb[0].mxu0
    %v351 = vpop.f32.mrb[0].mxu0
    %v352 = vadd.f32 0.0, %v351
    %v353 = vpop.f32.mrb[0].mxu0
    %354 = vdwg.mxu0
    %v355 = vpack.c.bf16 %v306, %v306
    %v356 = vpack.c.bf16 %v310, %v310
    %v357 = vpack.c.bf16 %v308, %v308
    %v358 = vpack.c.bf16 %v312, %v312
    %vm359 = vcmask 130048
    %v361 = vsel %vm359, %v355, 0
    %v364 = vsel %vm359, %v357, 0
    %366 = vmatprep.subr.bf16.mxu0 0
    %367 = vmatpush1.bf16.xpose.msra.mxu0 %v364
    %368 = vmatprep.subr.bf16.mxu0 0
    %369 = vmatpush1.bf16.xpose.msra.mxu0 0
    %370 = vmatprep.subr.bf16.mxu0 0
    %371 = vmatpush1.bf16.xpose.msra.mxu0 0
    %372 = vmatprep.subr.bf16.mxu0 0
    %373 = vmatpush1.bf16.xpose.msra.mxu0 0
    %374 = vmatprep.subr.bf16.mxu0 0
    %375 = vmatpush1.bf16.xpose.msra.mxu0 0
    %376 = vmatprep.subr.bf16.mxu0 0
    %377 = vmatpush1.bf16.xpose.msra.mxu0 0
    %378 = vmatprep.subr.bf16.mxu0 0
    %379 = vmatpush1.bf16.xpose.msra.mxu0 0
    %380 = vmatprep.subr.bf16.mxu0 0
    %381 = vmatpush1.bf16.xpose.msra.mxu0 0
    %382 = vmatprep.subr.bf16.mxu0 0
    %383 = vmatpush1.bf16.xpose.msra.mxu0 0
    %384 = vmatprep.subr.bf16.mxu0 0
    %385 = vmatpush1.bf16.xpose.msra.mxu0 0
    %386 = vmatprep.subr.bf16.mxu0 0
    %387 = vmatpush1.bf16.xpose.msra.mxu0 0
    %388 = vmatprep.subr.bf16.mxu0 0
    %389 = vmatpush1.bf16.xpose.msra.mxu0 0
    %390 = vmatprep.subr.bf16.mxu0 0
    %391 = vmatpush1.bf16.xpose.msra.mxu0 0
    %392 = vmatprep.subr.bf16.mxu0 0
    %393 = vmatpush1.bf16.xpose.msra.mxu0 0
    %394 = vmatprep.subr.bf16.mxu0 0
    %395 = vmatpush1.bf16.xpose.msra.mxu0 0
    %396 = vmatprep.subr.bf16.mxu0 0
    %397 = vmatpush1.bf16.xpose.msra.mxu0 0
    %398 = vmatprep.mubr.bf16.mxu0 0
    %399 = vmatmul.mubr.bf16.gmra.mrb[0].mxu0 %v361
    %v400 = vpop.f32.mrb[0].mxu0
    %v401 = vadd.f32 0.0, %v400
    %v402 = vpop.f32.mrb[0].mxu0
    %v403 = vpop.f32.mrb[0].mxu0
    %v404 = vpop.f32.mrb[0].mxu0
    %405 = vdwg.mxu0
    %v407 = vsel %vm359, %v356, 0
    %v410 = vsel %vm359, %v358, 0
    %412 = vmatprep.subr.bf16.mxu0 0
    %413 = vmatpush1.bf16.xpose.msra.mxu0 %v410
    %414 = vmatprep.subr.bf16.mxu0 0
    %415 = vmatpush1.bf16.xpose.msra.mxu0 0
    %416 = vmatprep.subr.bf16.mxu0 0
    %417 = vmatpush1.bf16.xpose.msra.mxu0 0
    %418 = vmatprep.subr.bf16.mxu0 0
    %419 = vmatpush1.bf16.xpose.msra.mxu0 0
    %420 = vmatprep.subr.bf16.mxu0 0
    %421 = vmatpush1.bf16.xpose.msra.mxu0 0
    %422 = vmatprep.subr.bf16.mxu0 0
    %423 = vmatpush1.bf16.xpose.msra.mxu0 0
    %424 = vmatprep.subr.bf16.mxu0 0
    %425 = vmatpush1.bf16.xpose.msra.mxu0 0
    %426 = vmatprep.subr.bf16.mxu0 0
    %427 = vmatpush1.bf16.xpose.msra.mxu0 0
    %428 = vmatprep.subr.bf16.mxu0 0
    %429 = vmatpush1.bf16.xpose.msra.mxu0 0
    %430 = vmatprep.subr.bf16.mxu0 0
    %431 = vmatpush1.bf16.xpose.msra.mxu0 0
    %432 = vmatprep.subr.bf16.mxu0 0
    %433 = vmatpush1.bf16.xpose.msra.mxu0 0
    %434 = vmatprep.subr.bf16.mxu0 0
    %435 = vmatpush1.bf16.xpose.msra.mxu0 0
    %436 = vmatprep.subr.bf16.mxu0 0
    %437 = vmatpush1.bf16.xpose.msra.mxu0 0
    %438 = vmatprep.subr.bf16.mxu0 0
    %439 = vmatpush1.bf16.xpose.msra.mxu0 0
    %440 = vmatprep.subr.bf16.mxu0 0
    %441 = vmatpush1.bf16.xpose.msra.mxu0 0
    %442 = vmatprep.subr.bf16.mxu0 0
    %443 = vmatpush1.bf16.xpose.msra.mxu0 0
    %444 = vmatprep.mubr.bf16.mxu0 0
    %445 = vmatmul.mubr.bf16.gmra.mrb[0].mxu0 %v407
    %v446 = vpop.f32.mrb[0].mxu0
    %v447 = vadd.f32 0.0, %v446
    %v448 = vpop.f32.mrb[0].mxu0
    %v449 = vpop.f32.mrb[0].mxu0
    %v450 = vpop.f32.mrb[0].mxu0
    %451 = vdwg.mxu0
    %v452 = vmul.f32 %v401, 0.25
    %v453 = vmul.f32 %v447, 0.25
    %vm454 = vcmask 64512
    %v455 = vsel %vm454, %v452, -inf
    %456 = vmax.xlane.f32.xlu0 %v455
    %v457 = vpop.xlane.xlu0 %456
    %v458 = vsel %vm454, %v453, -inf
    %459 = vmax.xlane.f32.xlu0 %v458
    %v460 = vpop.xlane.xlu0 %459
    %v461 = vsub.f32 %v452, %v457
    %v462 = vsub.f32 %v453, %v460
    %v463 = vmul.f32 %v461, 1.442695
    %v464 = vpow.pop %v463
    %v465 = vmul.f32 %v462, 1.442695
    %v466 = vpow.pop %v465
    %v467 = vsel %vm454, %v464, 0.0
    %468 = vadd.xlane.f32.xlu0 %v467
    %v469 = vpop.xlane.xlu0 %468
    %v470 = vsel %vm454, %v466, 0.0
    %471 = vadd.xlane.f32.xlu0 %v470
    %v472 = vpop.xlane.xlu0 %471
    %v473 = vrcp.pop %v469
    %v474 = vrcp.pop %v472
    %v475 = vmul.f32 %v464, %v473
    %v476 = vmul.f32 %v466, %v474
    %v477 = vpack.c.bf16 %v475, %v475
    %v478 = vpack.c.bf16 %v476, %v476
    %v479 = vpack.c.bf16 %v349, %v349
    %v480 = vpack.c.bf16 %v352, %v352
    %v482 = vsel %vm454, %v477, 0
    %vm484 = vcmask 1043456
    %v486 = vsel %vm484, %v479, 0
    %488 = vmatprep.subr.bf16.mxu0 0
    %489 = vmatpush1.bf16.msra.mxu0 %v486
    %490 = vmatprep.subr.bf16.mxu0 0
    %491 = vmatpush1.bf16.msra.mxu0 0
    %492 = vmatprep.subr.bf16.mxu0 0
    %493 = vmatpush1.bf16.msra.mxu0 0
    %494 = vmatprep.subr.bf16.mxu0 0
    %495 = vmatpush1.bf16.msra.mxu0 0
    %496 = vmatprep.subr.bf16.mxu0 0
    %497 = vmatpush1.bf16.msra.mxu0 0
    %498 = vmatprep.subr.bf16.mxu0 0
    %499 = vmatpush1.bf16.msra.mxu0 0
    %500 = vmatprep.subr.bf16.mxu0 0
    %501 = vmatpush1.bf16.msra.mxu0 0
    %502 = vmatprep.subr.bf16.mxu0 0
    %503 = vmatpush1.bf16.msra.mxu0 0
    %504 = vmatprep.subr.bf16.mxu0 0
    %505 = vmatpush1.bf16.msra.mxu0 0
    %506 = vmatprep.subr.bf16.mxu0 0
    %507 = vmatpush1.bf16.msra.mxu0 0
    %508 = vmatprep.subr.bf16.mxu0 0
    %509 = vmatpush1.bf16.msra.mxu0 0
    %510 = vmatprep.subr.bf16.mxu0 0
    %511 = vmatpush1.bf16.msra.mxu0 0
    %512 = vmatprep.subr.bf16.mxu0 0
    %513 = vmatpush1.bf16.msra.mxu0 0
    %514 = vmatprep.subr.bf16.mxu0 0
    %515 = vmatpush1.bf16.msra.mxu0 0
    %516 = vmatprep.subr.bf16.mxu0 0
    %517 = vmatpush1.bf16.msra.mxu0 0
    %518 = vmatprep.subr.bf16.mxu0 0
    %519 = vmatpush1.bf16.msra.mxu0 0
    %520 = vmatprep.mubr.bf16.mxu0 0
    %521 = vmatmul.mubr.bf16.gmra.mrb[0].mxu0 %v482
    %v522 = vpop.f32.mrb[0].mxu0
    %v523 = vadd.f32 0.0, %v522
    %v524 = vpop.f32.mrb[0].mxu0
    %v525 = vpop.f32.mrb[0].mxu0
    %v526 = vpop.f32.mrb[0].mxu0
    %527 = vdwg.mxu0
    %v529 = vsel %vm454, %v478, 0
    %v532 = vsel %vm484, %v480, 0
    %534 = vmatprep.subr.bf16.mxu0 0
    %535 = vmatpush1.bf16.msra.mxu0 %v532
    %536 = vmatprep.subr.bf16.mxu0 0
    %537 = vmatpush1.bf16.msra.mxu0 0
    %538 = vmatprep.subr.bf16.mxu0 0
    %539 = vmatpush1.bf16.msra.mxu0 0
    %540 = vmatprep.subr.bf16.mxu0 0
    %541 = vmatpush1.bf16.msra.mxu0 0
    %542 = vmatprep.subr.bf16.mxu0 0
    %543 = vmatpush1.bf16.msra.mxu0 0
    %544 = vmatprep.subr.bf16.mxu0 0
    %545 = vmatpush1.bf16.msra.mxu0 0
    %546 = vmatprep.subr.bf16.mxu0 0
    %547 = vmatpush1.bf16.msra.mxu0 0
    %548 = vmatprep.subr.bf16.mxu0 0
    %549 = vmatpush1.bf16.msra.mxu0 0
    %550 = vmatprep.subr.bf16.mxu0 0
    %551 = vmatpush1.bf16.msra.mxu0 0
    %552 = vmatprep.subr.bf16.mxu0 0
    %553 = vmatpush1.bf16.msra.mxu0 0
    %554 = vmatprep.subr.bf16.mxu0 0
    %555 = vmatpush1.bf16.msra.mxu0 0
    %556 = vmatprep.subr.bf16.mxu0 0
    %557 = vmatpush1.bf16.msra.mxu0 0
    %558 = vmatprep.subr.bf16.mxu0 0
    %559 = vmatpush1.bf16.msra.mxu0 0
    %560 = vmatprep.subr.bf16.mxu0 0
    %561 = vmatpush1.bf16.msra.mxu0 0
    %562 = vmatprep.subr.bf16.mxu0 0
    %563 = vmatpush1.bf16.msra.mxu0 0
    %564 = vmatprep.subr.bf16.mxu0 0
    %565 = vmatpush1.bf16.msra.mxu0 0
    %566 = vmatprep.mubr.bf16.mxu0 0
    %567 = vmatmul.mubr.bf16.gmra.mrb[0].mxu0 %v529
    %v568 = vpop.f32.mrb[0].mxu0
    %v569 = vadd.f32 0.0, %v568
    %v570 = vpop.f32.mrb[0].mxu0
    %v571 = vpop.f32.mrb[0].mxu0
    %v572 = vpop.f32.mrb[0].mxu0
    %573 = vdwg.mxu0
    %575 = vrot.lane.b32.xlu0 %v355, 112
    %v576 = vpop.permute.xlu0 %575
    %578 = vrot.lane.b32.xlu0 %v357, 112
    %v579 = vpop.permute.xlu0 %578
    %v581 = vsel %vm359, %v576, 0
    %v584 = vsel %vm359, %v579, 0
    %586 = vmatprep.subr.bf16.mxu0 0
    %587 = vmatpush1.bf16.xpose.msra.mxu0 %v584
    %588 = vmatprep.subr.bf16.mxu0 0
    %589 = vmatpush1.bf16.xpose.msra.mxu0 0
    %590 = vmatprep.subr.bf16.mxu0 0
    %591 = vmatpush1.bf16.xpose.msra.mxu0 0
    %592 = vmatprep.subr.bf16.mxu0 0
    %593 = vmatpush1.bf16.xpose.msra.mxu0 0
    %594 = vmatprep.subr.bf16.mxu0 0
    %595 = vmatpush1.bf16.xpose.msra.mxu0 0
    %596 = vmatprep.subr.bf16.mxu0 0
    %597 = vmatpush1.bf16.xpose.msra.mxu0 0
    %598 = vmatprep.subr.bf16.mxu0 0
    %599 = vmatpush1.bf16.xpose.msra.mxu0 0
    %600 = vmatprep.subr.bf16.mxu0 0
    %601 = vmatpush1.bf16.xpose.msra.mxu0 0
    %602 = vmatprep.subr.bf16.mxu0 0
    %603 = vmatpush1.bf16.xpose.msra.mxu0 0
    %604 = vmatprep.subr.bf16.mxu0 0
    %605 = vmatpush1.bf16.xpose.msra.mxu0 0
    %606 = vmatprep.subr.bf16.mxu0 0
    %607 = vmatpush1.bf16.xpose.msra.mxu0 0
    %608 = vmatprep.subr.bf16.mxu0 0
    %609 = vmatpush1.bf16.xpose.msra.mxu0 0
    %610 = vmatprep.subr.bf16.mxu0 0
    %611 = vmatpush1.bf16.xpose.msra.mxu0 0
    %612 = vmatprep.subr.bf16.mxu0 0
    %613 = vmatpush1.bf16.xpose.msra.mxu0 0
    %614 = vmatprep.subr.bf16.mxu0 0
    %615 = vmatpush1.bf16.xpose.msra.mxu0 0
    %616 = vmatprep.subr.bf16.mxu0 0
    %617 = vmatpush1.bf16.xpose.msra.mxu0 0
    %618 = vmatprep.mubr.bf16.mxu0 0
    %619 = vmatmul.mubr.bf16.gmra.mrb[0].mxu0 %v581
    %v620 = vpop.f32.mrb[0].mxu0
    %v621 = vadd.f32 0.0, %v620
    %v622 = vpop.f32.mrb[0].mxu0
    %v623 = vpop.f32.mrb[0].mxu0
    %v624 = vpop.f32.mrb[0].mxu0
    %625 = vdwg.mxu0
    %627 = vrot.lane.b32.xlu0 %v356, 112
    %v628 = vpop.permute.xlu0 %627
    %630 = vrot.lane.b32.xlu0 %v358, 112
    %v631 = vpop.permute.xlu0 %630
    %v633 = vsel %vm359, %v628, 0
    %v636 = vsel %vm359, %v631, 0
    %638 = vmatprep.subr.bf16.mxu0 0
    %639 = vmatpush1.bf16.xpose.msra.mxu0 %v636
    %640 = vmatprep.subr.bf16.mxu0 0
    %641 = vmatpush1.bf16.xpose.msra.mxu0 0
    %642 = vmatprep.subr.bf16.mxu0 0
    %643 = vmatpush1.bf16.xpose.msra.mxu0 0
    %644 = vmatprep.subr.bf16.mxu0 0
    %645 = vmatpush1.bf16.xpose.msra.mxu0 0
    %646 = vmatprep.subr.bf16.mxu0 0
    %647 = vmatpush1.bf16.xpose.msra.mxu0 0
    %648 = vmatprep.subr.bf16.mxu0 0
    %649 = vmatpush1.bf16.xpose.msra.mxu0 0
    %650 = vmatprep.subr.bf16.mxu0 0
    %651 = vmatpush1.bf16.xpose.msra.mxu0 0
    %652 = vmatprep.subr.bf16.mxu0 0
    %653 = vmatpush1.bf16.xpose.msra.mxu0 0
    %654 = vmatprep.subr.bf16.mxu0 0
    %655 = vmatpush1.bf16.xpose.msra.mxu0 0
    %656 = vmatprep.subr.bf16.mxu0 0
    %657 = vmatpush1.bf16.xpose.msra.mxu0 0
    %658 = vmatprep.subr.bf16.mxu0 0
    %659 = vmatpush1.bf16.xpose.msra.mxu0 0
    %660 = vmatprep.subr.bf16.mxu0 0
    %661 = vmatpush1.bf16.xpose.msra.mxu0 0
    %662 = vmatprep.subr.bf16.mxu0 0
    %663 = vmatpush1.bf16.xpose.msra.mxu0 0
    %664 = vmatprep.subr.bf16.mxu0 0
    %665 = vmatpush1.bf16.xpose.msra.mxu0 0
    %666 = vmatprep.subr.bf16.mxu0 0
    %667 = vmatpush1.bf16.xpose.msra.mxu0 0
    %668 = vmatprep.subr.bf16.mxu0 0
    %669 = vmatpush1.bf16.xpose.msra.mxu0 0
    %670 = vmatprep.mubr.bf16.mxu0 0
    %671 = vmatmul.mubr.bf16.gmra.mrb[0].mxu0 %v633
    %v672 = vpop.f32.mrb[0].mxu0
    %v673 = vadd.f32 0.0, %v672
    %v674 = vpop.f32.mrb[0].mxu0
    %v675 = vpop.f32.mrb[0].mxu0
    %v676 = vpop.f32.mrb[0].mxu0
    %677 = vdwg.mxu0
    %v678 = vmul.f32 %v621, 0.25
    %v679 = vmul.f32 %v673, 0.25
    %v680 = vsel %vm454, %v678, -inf
    %681 = vmax.xlane.f32.xlu0 %v680
    %v682 = vpop.xlane.xlu0 %681
    %v683 = vsel %vm454, %v679, -inf
    %684 = vmax.xlane.f32.xlu0 %v683
    %v685 = vpop.xlane.xlu0 %684
    %v686 = vsub.f32 %v678, %v682
    %v687 = vsub.f32 %v679, %v685
    %v688 = vmul.f32 %v686, 1.442695
    %v689 = vpow.pop %v688
    %v690 = vmul.f32 %v687, 1.442695
    %v691 = vpow.pop %v690
    %v692 = vsel %vm454, %v689, 0.0
    %693 = vadd.xlane.f32.xlu0 %v692
    %v694 = vpop.xlane.xlu0 %693
    %v695 = vsel %vm454, %v691, 0.0
    %696 = vadd.xlane.f32.xlu0 %v695
    %v697 = vpop.xlane.xlu0 %696
    %v698 = vrcp.pop %v694
    %v699 = vrcp.pop %v697
    %v700 = vmul.f32 %v689, %v698
    %v701 = vmul.f32 %v691, %v699
    %v702 = vpack.c.bf16 %v700, %v700
    %v703 = vpack.c.bf16 %v701, %v701
    %705 = vrot.lane.b32.xlu0 %v479, 112
    %v706 = vpop.permute.xlu0 %705
    %v708 = vsel %vm454, %v702, 0
    %v711 = vsel %vm484, %v706, 0
    %713 = vmatprep.subr.bf16.mxu0 0
    %714 = vmatpush1.bf16.msra.mxu0 %v711
    %715 = vmatprep.subr.bf16.mxu0 0
    %716 = vmatpush1.bf16.msra.mxu0 0
    %717 = vmatprep.subr.bf16.mxu0 0
    %718 = vmatpush1.bf16.msra.mxu0 0
    %719 = vmatprep.subr.bf16.mxu0 0
    %720 = vmatpush1.bf16.msra.mxu0 0
    %721 = vmatprep.subr.bf16.mxu0 0
    %722 = vmatpush1.bf16.msra.mxu0 0
    %723 = vmatprep.subr.bf16.mxu0 0
    %724 = vmatpush1.bf16.msra.mxu0 0
    %725 = vmatprep.subr.bf16.mxu0 0
    %726 = vmatpush1.bf16.msra.mxu0 0
    %727 = vmatprep.subr.bf16.mxu0 0
    %728 = vmatpush1.bf16.msra.mxu0 0
    %729 = vmatprep.subr.bf16.mxu0 0
    %730 = vmatpush1.bf16.msra.mxu0 0
    %731 = vmatprep.subr.bf16.mxu0 0
    %732 = vmatpush1.bf16.msra.mxu0 0
    %733 = vmatprep.subr.bf16.mxu0 0
    %734 = vmatpush1.bf16.msra.mxu0 0
    %735 = vmatprep.subr.bf16.mxu0 0
    %736 = vmatpush1.bf16.msra.mxu0 0
    %737 = vmatprep.subr.bf16.mxu0 0
    %738 = vmatpush1.bf16.msra.mxu0 0
    %739 = vmatprep.subr.bf16.mxu0 0
    %740 = vmatpush1.bf16.msra.mxu0 0
    %741 = vmatprep.subr.bf16.mxu0 0
    %742 = vmatpush1.bf16.msra.mxu0 0
    %743 = vmatprep.subr.bf16.mxu0 0
    %744 = vmatpush1.bf16.msra.mxu0 0
    %745 = vmatprep.mubr.bf16.mxu0 0
    %746 = vmatmul.mubr.bf16.gmra.mrb[0].mxu0 %v708
    %v747 = vpop.f32.mrb[0].mxu0
    %v748 = vadd.f32 0.0, %v747
    %v749 = vpop.f32.mrb[0].mxu0
    %v750 = vpop.f32.mrb[0].mxu0
    %v751 = vpop.f32.mrb[0].mxu0
    %752 = vdwg.mxu0
    %754 = vrot.lane.b32.xlu0 %v480, 112
    %v755 = vpop.permute.xlu0 %754
    %v757 = vsel %vm454, %v703, 0
    %v760 = vsel %vm484, %v755, 0
    %762 = vmatprep.subr.bf16.mxu0 0
    %763 = vmatpush1.bf16.msra.mxu0 %v760
    %764 = vmatprep.subr.bf16.mxu0 0
    %765 = vmatpush1.bf16.msra.mxu0 0
    %766 = vmatprep.subr.bf16.mxu0 0
    %767 = vmatpush1.bf16.msra.mxu0 0
    %768 = vmatprep.subr.bf16.mxu0 0
    %769 = vmatpush1.bf16.msra.mxu0 0
    %770 = vmatprep.subr.bf16.mxu0 0
    %771 = vmatpush1.bf16.msra.mxu0 0
    %772 = vmatprep.subr.bf16.mxu0 0
    %773 = vmatpush1.bf16.msra.mxu0 0
    %774 = vmatprep.subr.bf16.mxu0 0
    %775 = vmatpush1.bf16.msra.mxu0 0
    %776 = vmatprep.subr.bf16.mxu0 0
    %777 = vmatpush1.bf16.msra.mxu0 0
    %778 = vmatprep.subr.bf16.mxu0 0
    %779 = vmatpush1.bf16.msra.mxu0 0
    %780 = vmatprep.subr.bf16.mxu0 0
    %781 = vmatpush1.bf16.msra.mxu0 0
    %782 = vmatprep.subr.bf16.mxu0 0
    %783 = vmatpush1.bf16.msra.mxu0 0
    %784 = vmatprep.subr.bf16.mxu0 0
    %785 = vmatpush1.bf16.msra.mxu0 0
    %786 = vmatprep.subr.bf16.mxu0 0
    %787 = vmatpush1.bf16.msra.mxu0 0
    %788 = vmatprep.subr.bf16.mxu0 0
    %789 = vmatpush1.bf16.msra.mxu0 0
    %790 = vmatprep.subr.bf16.mxu0 0
    %791 = vmatpush1.bf16.msra.mxu0 0
    %792 = vmatprep.subr.bf16.mxu0 0
    %793 = vmatpush1.bf16.msra.mxu0 0
    %794 = vmatprep.mubr.bf16.mxu0 0
    %795 = vmatmul.mubr.bf16.gmra.mrb[0].mxu0 %v757
    %v796 = vpop.f32.mrb[0].mxu0
    %v797 = vadd.f32 0.0, %v796
    %v798 = vpop.f32.mrb[0].mxu0
    %v799 = vpop.f32.mrb[0].mxu0
    %v800 = vpop.f32.mrb[0].mxu0
    %801 = vdwg.mxu0
    %802 = vrot.lane.b32.xlu0 %v355, 96
    %v803 = vpop.permute.xlu0 %802
    %804 = vrot.lane.b32.xlu0 %v357, 96
    %v805 = vpop.permute.xlu0 %804
    %v807 = vsel %vm359, %v803, 0
    %v810 = vsel %vm359, %v805, 0
    %812 = vmatprep.subr.bf16.mxu0 0
    %813 = vmatpush1.bf16.xpose.msra.mxu0 %v810
    %814 = vmatprep.subr.bf16.mxu0 0
    %815 = vmatpush1.bf16.xpose.msra.mxu0 0
    %816 = vmatprep.subr.bf16.mxu0 0
    %817 = vmatpush1.bf16.xpose.msra.mxu0 0
    %818 = vmatprep.subr.bf16.mxu0 0
    %819 = vmatpush1.bf16.xpose.msra.mxu0 0
    %820 = vmatprep.subr.bf16.mxu0 0
    %821 = vmatpush1.bf16.xpose.msra.mxu0 0
    %822 = vmatprep.subr.bf16.mxu0 0
    %823 = vmatpush1.bf16.xpose.msra.mxu0 0
    %824 = vmatprep.subr.bf16.mxu0 0
    %825 = vmatpush1.bf16.xpose.msra.mxu0 0
    %826 = vmatprep.subr.bf16.mxu0 0
    %827 = vmatpush1.bf16.xpose.msra.mxu0 0
    %828 = vmatprep.subr.bf16.mxu0 0
    %829 = vmatpush1.bf16.xpose.msra.mxu0 0
    %830 = vmatprep.subr.bf16.mxu0 0
    %831 = vmatpush1.bf16.xpose.msra.mxu0 0
    %832 = vmatprep.subr.bf16.mxu0 0
    %833 = vmatpush1.bf16.xpose.msra.mxu0 0
    %834 = vmatprep.subr.bf16.mxu0 0
    %835 = vmatpush1.bf16.xpose.msra.mxu0 0
    %836 = vmatprep.subr.bf16.mxu0 0
    %837 = vmatpush1.bf16.xpose.msra.mxu0 0
    %838 = vmatprep.subr.bf16.mxu0 0
    %839 = vmatpush1.bf16.xpose.msra.mxu0 0
    %840 = vmatprep.subr.bf16.mxu0 0
    %841 = vmatpush1.bf16.xpose.msra.mxu0 0
    %842 = vmatprep.subr.bf16.mxu0 0
    %843 = vmatpush1.bf16.xpose.msra.mxu0 0
    %844 = vmatprep.mubr.bf16.mxu0 0
    %845 = vmatmul.mubr.bf16.gmra.mrb[0].mxu0 %v807
    %v846 = vpop.f32.mrb[0].mxu0
    %v847 = vadd.f32 0.0, %v846
    %v848 = vpop.f32.mrb[0].mxu0
    %v849 = vpop.f32.mrb[0].mxu0
    %v850 = vpop.f32.mrb[0].mxu0
    %851 = vdwg.mxu0
    %852 = vrot.lane.b32.xlu0 %v356, 96
    %v853 = vpop.permute.xlu0 %852
    %854 = vrot.lane.b32.xlu0 %v358, 96
    %v855 = vpop.permute.xlu0 %854
    %v857 = vsel %vm359, %v853, 0
    %v860 = vsel %vm359, %v855, 0
    %862 = vmatprep.subr.bf16.mxu0 0
    %863 = vmatpush1.bf16.xpose.msra.mxu0 %v860
    %864 = vmatprep.subr.bf16.mxu0 0
    %865 = vmatpush1.bf16.xpose.msra.mxu0 0
    %866 = vmatprep.subr.bf16.mxu0 0
    %867 = vmatpush1.bf16.xpose.msra.mxu0 0
    %868 = vmatprep.subr.bf16.mxu0 0
    %869 = vmatpush1.bf16.xpose.msra.mxu0 0
    %870 = vmatprep.subr.bf16.mxu0 0
    %871 = vmatpush1.bf16.xpose.msra.mxu0 0
    %872 = vmatprep.subr.bf16.mxu0 0
    %873 = vmatpush1.bf16.xpose.msra.mxu0 0
    %874 = vmatprep.subr.bf16.mxu0 0
    %875 = vmatpush1.bf16.xpose.msra.mxu0 0
    %876 = vmatprep.subr.bf16.mxu0 0
    %877 = vmatpush1.bf16.xpose.msra.mxu0 0
    %878 = vmatprep.subr.bf16.mxu0 0
    %879 = vmatpush1.bf16.xpose.msra.mxu0 0
    %880 = vmatprep.subr.bf16.mxu0 0
    %881 = vmatpush1.bf16.xpose.msra.mxu0 0
    %882 = vmatprep.subr.bf16.mxu0 0
    %883 = vmatpush1.bf16.xpose.msra.mxu0 0
    %884 = vmatprep.subr.bf16.mxu0 0
    %885 = vmatpush1.bf16.xpose.msra.mxu0 0
    %886 = vmatprep.subr.bf16.mxu0 0
    %887 = vmatpush1.bf16.xpose.msra.mxu0 0
    %888 = vmatprep.subr.bf16.mxu0 0
    %889 = vmatpush1.bf16.xpose.msra.mxu0 0
    %890 = vmatprep.subr.bf16.mxu0 0
    %891 = vmatpush1.bf16.xpose.msra.mxu0 0
    %892 = vmatprep.subr.bf16.mxu0 0
    %893 = vmatpush1.bf16.xpose.msra.mxu0 0
    %894 = vmatprep.mubr.bf16.mxu0 0
    %895 = vmatmul.mubr.bf16.gmra.mrb[0].mxu0 %v857
    %v896 = vpop.f32.mrb[0].mxu0
    %v897 = vadd.f32 0.0, %v896
    %v898 = vpop.f32.mrb[0].mxu0
    %v899 = vpop.f32.mrb[0].mxu0
    %v900 = vpop.f32.mrb[0].mxu0
    %901 = vdwg.mxu0
    %v902 = vmul.f32 %v847, 0.25
    %v903 = vmul.f32 %v897, 0.25
    %v904 = vsel %vm454, %v902, -inf
    %905 = vmax.xlane.f32.xlu0 %v904
    %v906 = vpop.xlane.xlu0 %905
    %v907 = vsel %vm454, %v903, -inf
    %908 = vmax.xlane.f32.xlu0 %v907
    %v909 = vpop.xlane.xlu0 %908
    %v910 = vsub.f32 %v902, %v906
    %v911 = vsub.f32 %v903, %v909
    %v912 = vmul.f32 %v910, 1.442695
    %v913 = vpow.pop %v912
    %v914 = vmul.f32 %v911, 1.442695
    %v915 = vpow.pop %v914
    %v916 = vsel %vm454, %v913, 0.0
    %917 = vadd.xlane.f32.xlu0 %v916
    %v918 = vpop.xlane.xlu0 %917
    %v919 = vsel %vm454, %v915, 0.0
    %920 = vadd.xlane.f32.xlu0 %v919
    %v921 = vpop.xlane.xlu0 %920
    %v922 = vrcp.pop %v918
    %v923 = vrcp.pop %v921
    %v924 = vmul.f32 %v913, %v922
    %v925 = vmul.f32 %v915, %v923
    %v926 = vpack.c.bf16 %v924, %v924
    %v927 = vpack.c.bf16 %v925, %v925
    %928 = vrot.lane.b32.xlu0 %v479, 96
    %v929 = vpop.permute.xlu0 %928
    %v931 = vsel %vm454, %v926, 0
    %v934 = vsel %vm484, %v929, 0
    %936 = vmatprep.subr.bf16.mxu0 0
    %937 = vmatpush1.bf16.msra.mxu0 %v934
    %938 = vmatprep.subr.bf16.mxu0 0
    %939 = vmatpush1.bf16.msra.mxu0 0
    %940 = vmatprep.subr.bf16.mxu0 0
    %941 = vmatpush1.bf16.msra.mxu0 0
    %942 = vmatprep.subr.bf16.mxu0 0
    %943 = vmatpush1.bf16.msra.mxu0 0
    %944 = vmatprep.subr.bf16.mxu0 0
    %945 = vmatpush1.bf16.msra.mxu0 0
    %946 = vmatprep.subr.bf16.mxu0 0
    %947 = vmatpush1.bf16.msra.mxu0 0
    %948 = vmatprep.subr.bf16.mxu0 0
    %949 = vmatpush1.bf16.msra.mxu0 0
    %950 = vmatprep.subr.bf16.mxu0 0
    %951 = vmatpush1.bf16.msra.mxu0 0
    %952 = vmatprep.subr.bf16.mxu0 0
    %953 = vmatpush1.bf16.msra.mxu0 0
    %954 = vmatprep.subr.bf16.mxu0 0
    %955 = vmatpush1.bf16.msra.mxu0 0
    %956 = vmatprep.subr.bf16.mxu0 0
    %957 = vmatpush1.bf16.msra.mxu0 0
    %958 = vmatprep.subr.bf16.mxu0 0
    %959 = vmatpush1.bf16.msra.mxu0 0
    %960 = vmatprep.subr.bf16.mxu0 0
    %961 = vmatpush1.bf16.msra.mxu0 0
    %962 = vmatprep.subr.bf16.mxu0 0
    %963 = vmatpush1.bf16.msra.mxu0 0
    %964 = vmatprep.subr.bf16.mxu0 0
    %965 = vmatpush1.bf16.msra.mxu0 0
    %966 = vmatprep.subr.bf16.mxu0 0
    %967 = vmatpush1.bf16.msra.mxu0 0
    %968 = vmatprep.mubr.bf16.mxu0 0
    %969 = vmatmul.mubr.bf16.gmra.mrb[0].mxu0 %v931
    %v970 = vpop.f32.mrb[0].mxu0
    %v971 = vadd.f32 0.0, %v970
    %v972 = vpop.f32.mrb[0].mxu0
    %v973 = vpop.f32.mrb[0].mxu0
    %v974 = vpop.f32.mrb[0].mxu0
    %975 = vdwg.mxu0
    %976 = vrot.lane.b32.xlu0 %v480, 96
    %v977 = vpop.permute.xlu0 %976
    %v979 = vsel %vm454, %v927, 0
    %v982 = vsel %vm484, %v977, 0
    %984 = vmatprep.subr.bf16.mxu0 0
    %985 = vmatpush1.bf16.msra.mxu0 %v982
    %986 = vmatprep.subr.bf16.mxu0 0
    %987 = vmatpush1.bf16.msra.mxu0 0
    %988 = vmatprep.subr.bf16.mxu0 0
    %989 = vmatpush1.bf16.msra.mxu0 0
    %990 = vmatprep.subr.bf16.mxu0 0
    %991 = vmatpush1.bf16.msra.mxu0 0
    %992 = vmatprep.subr.bf16.mxu0 0
    %993 = vmatpush1.bf16.msra.mxu0 0
    %994 = vmatprep.subr.bf16.mxu0 0
    %995 = vmatpush1.bf16.msra.mxu0 0
    %996 = vmatprep.subr.bf16.mxu0 0
    %997 = vmatpush1.bf16.msra.mxu0 0
    %998 = vmatprep.subr.bf16.mxu0 0
    %999 = vmatpush1.bf16.msra.mxu0 0
    %1000 = vmatprep.subr.bf16.mxu0 0
    %1001 = vmatpush1.bf16.msra.mxu0 0
    %1002 = vmatprep.subr.bf16.mxu0 0
    %1003 = vmatpush1.bf16.msra.mxu0 0
    %1004 = vmatprep.subr.bf16.mxu0 0
    %1005 = vmatpush1.bf16.msra.mxu0 0
    %1006 = vmatprep.subr.bf16.mxu0 0
    %1007 = vmatpush1.bf16.msra.mxu0 0
    %1008 = vmatprep.subr.bf16.mxu0 0
    %1009 = vmatpush1.bf16.msra.mxu0 0
    %1010 = vmatprep.subr.bf16.mxu0 0
    %1011 = vmatpush1.bf16.msra.mxu0 0
    %1012 = vmatprep.subr.bf16.mxu0 0
    %1013 = vmatpush1.bf16.msra.mxu0 0
    %1014 = vmatprep.subr.bf16.mxu0 0
    %1015 = vmatpush1.bf16.msra.mxu0 0
    %1016 = vmatprep.mubr.bf16.mxu0 0
    %1017 = vmatmul.mubr.bf16.gmra.mrb[0].mxu0 %v979
    %v1018 = vpop.f32.mrb[0].mxu0
    %v1019 = vadd.f32 0.0, %v1018
    %v1020 = vpop.f32.mrb[0].mxu0
    %v1021 = vpop.f32.mrb[0].mxu0
    %v1022 = vpop.f32.mrb[0].mxu0
    %1023 = vdwg.mxu0
    %1024 = vrot.lane.b32.xlu0 %v355, 80
    %v1025 = vpop.permute.xlu0 %1024
    %1026 = vrot.lane.b32.xlu0 %v357, 80
    %v1027 = vpop.permute.xlu0 %1026
    %v1029 = vsel %vm359, %v1025, 0
    %v1032 = vsel %vm359, %v1027, 0
    %1034 = vmatprep.subr.bf16.mxu0 0
    %1035 = vmatpush1.bf16.xpose.msra.mxu0 %v1032
    %1036 = vmatprep.subr.bf16.mxu0 0
    %1037 = vmatpush1.bf16.xpose.msra.mxu0 0
    %1038 = vmatprep.subr.bf16.mxu0 0
    %1039 = vmatpush1.bf16.xpose.msra.mxu0 0
    %1040 = vmatprep.subr.bf16.mxu0 0
    %1041 = vmatpush1.bf16.xpose.msra.mxu0 0
    %1042 = vmatprep.subr.bf16.mxu0 0
    %1043 = vmatpush1.bf16.xpose.msra.mxu0 0
    %1044 = vmatprep.subr.bf16.mxu0 0
    %1045 = vmatpush1.bf16.xpose.msra.mxu0 0
    %1046 = vmatprep.subr.bf16.mxu0 0
    %1047 = vmatpush1.bf16.xpose.msra.mxu0 0
    %1048 = vmatprep.subr.bf16.mxu0 0
    %1049 = vmatpush1.bf16.xpose.msra.mxu0 0
    %1050 = vmatprep.subr.bf16.mxu0 0
    %1051 = vmatpush1.bf16.xpose.msra.mxu0 0
    %1052 = vmatprep.subr.bf16.mxu0 0
    %1053 = vmatpush1.bf16.xpose.msra.mxu0 0
    %1054 = vmatprep.subr.bf16.mxu0 0
    %1055 = vmatpush1.bf16.xpose.msra.mxu0 0
    %1056 = vmatprep.subr.bf16.mxu0 0
    %1057 = vmatpush1.bf16.xpose.msra.mxu0 0
    %1058 = vmatprep.subr.bf16.mxu0 0
    %1059 = vmatpush1.bf16.xpose.msra.mxu0 0
    %1060 = vmatprep.subr.bf16.mxu0 0
    %1061 = vmatpush1.bf16.xpose.msra.mxu0 0
    %1062 = vmatprep.subr.bf16.mxu0 0
    %1063 = vmatpush1.bf16.xpose.msra.mxu0 0
    %1064 = vmatprep.subr.bf16.mxu0 0
    %1065 = vmatpush1.bf16.xpose.msra.mxu0 0
    %1066 = vmatprep.mubr.bf16.mxu0 0
    %1067 = vmatmul.mubr.bf16.gmra.mrb[0].mxu0 %v1029
    %v1068 = vpop.f32.mrb[0].mxu0
    %v1069 = vadd.f32 0.0, %v1068
    %v1070 = vpop.f32.mrb[0].mxu0
    %v1071 = vpop.f32.mrb[0].mxu0
    %v1072 = vpop.f32.mrb[0].mxu0
    %1073 = vdwg.mxu0
    %1074 = vrot.lane.b32.xlu0 %v356, 80
    %v1075 = vpop.permute.xlu0 %1074
    %1076 = vrot.lane.b32.xlu0 %v358, 80
    %v1077 = vpop.permute.xlu0 %1076
    %v1079 = vsel %vm359, %v1075, 0
    %v1082 = vsel %vm359, %v1077, 0
    %1084 = vmatprep.subr.bf16.mxu0 0
    %1085 = vmatpush1.bf16.xpose.msra.mxu0 %v1082
    %1086 = vmatprep.subr.bf16.mxu0 0
    %1087 = vmatpush1.bf16.xpose.msra.mxu0 0
    %1088 = vmatprep.subr.bf16.mxu0 0
    %1089 = vmatpush1.bf16.xpose.msra.mxu0 0
    %1090 = vmatprep.subr.bf16.mxu0 0
    %1091 = vmatpush1.bf16.xpose.msra.mxu0 0
    %1092 = vmatprep.subr.bf16.mxu0 0
    %1093 = vmatpush1.bf16.xpose.msra.mxu0 0
    %1094 = vmatprep.subr.bf16.mxu0 0
    %1095 = vmatpush1.bf16.xpose.msra.mxu0 0
    %1096 = vmatprep.subr.bf16.mxu0 0
    %1097 = vmatpush1.bf16.xpose.msra.mxu0 0
    %1098 = vmatprep.subr.bf16.mxu0 0
    %1099 = vmatpush1.bf16.xpose.msra.mxu0 0
    %1100 = vmatprep.subr.bf16.mxu0 0
    %1101 = vmatpush1.bf16.xpose.msra.mxu0 0
    %1102 = vmatprep.subr.bf16.mxu0 0
    %1103 = vmatpush1.bf16.xpose.msra.mxu0 0
    %1104 = vmatprep.subr.bf16.mxu0 0
    %1105 = vmatpush1.bf16.xpose.msra.mxu0 0
    %1106 = vmatprep.subr.bf16.mxu0 0
    %1107 = vmatpush1.bf16.xpose.msra.mxu0 0
    %1108 = vmatprep.subr.bf16.mxu0 0
    %1109 = vmatpush1.bf16.xpose.msra.mxu0 0
    %1110 = vmatprep.subr.bf16.mxu0 0
    %1111 = vmatpush1.bf16.xpose.msra.mxu0 0
    %1112 = vmatprep.subr.bf16.mxu0 0
    %1113 = vmatpush1.bf16.xpose.msra.mxu0 0
    %1114 = vmatprep.subr.bf16.mxu0 0
    %1115 = vmatpush1.bf16.xpose.msra.mxu0 0
    %1116 = vmatprep.mubr.bf16.mxu0 0
    %1117 = vmatmul.mubr.bf16.gmra.mrb[0].mxu0 %v1079
    %v1118 = vpop.f32.mrb[0].mxu0
    %v1119 = vadd.f32 0.0, %v1118
    %v1120 = vpop.f32.mrb[0].mxu0
    %v1121 = vpop.f32.mrb[0].mxu0
    %v1122 = vpop.f32.mrb[0].mxu0
    %1123 = vdwg.mxu0
    %v1124 = vmul.f32 %v1069, 0.25
    %v1125 = vmul.f32 %v1119, 0.25
    %v1126 = vsel %vm454, %v1124, -inf
    %1127 = vmax.xlane.f32.xlu0 %v1126
    %v1128 = vpop.xlane.xlu0 %1127
    %v1129 = vsel %vm454, %v1125, -inf
    %1130 = vmax.xlane.f32.xlu0 %v1129
    %v1131 = vpop.xlane.xlu0 %1130
    %v1132 = vsub.f32 %v1124, %v1128
    %v1133 = vsub.f32 %v1125, %v1131
    %v1134 = vmul.f32 %v1132, 1.442695
    %v1135 = vpow.pop %v1134
    %v1136 = vmul.f32 %v1133, 1.442695
    %v1137 = vpow.pop %v1136
    %v1138 = vsel %vm454, %v1135, 0.0
    %1139 = vadd.xlane.f32.xlu0 %v1138
    %v1140 = vpop.xlane.xlu0 %1139
    %v1141 = vsel %vm454, %v1137, 0.0
    %1142 = vadd.xlane.f32.xlu0 %v1141
    %v1143 = vpop.xlane.xlu0 %1142
    %v1144 = vrcp.pop %v1140
    %v1145 = vrcp.pop %v1143
    %v1146 = vmul.f32 %v1135, %v1144
    %v1147 = vmul.f32 %v1137, %v1145
    %v1148 = vpack.c.bf16 %v1146, %v1146
    %v1149 = vpack.c.bf16 %v1147, %v1147
    %1150 = vrot.lane.b32.xlu0 %v479, 80
    %v1151 = vpop.permute.xlu0 %1150
    %v1153 = vsel %vm454, %v1148, 0
    %v1156 = vsel %vm484, %v1151, 0
    %1158 = vmatprep.subr.bf16.mxu0 0
    %1159 = vmatpush1.bf16.msra.mxu0 %v1156
    %1160 = vmatprep.subr.bf16.mxu0 0
    %1161 = vmatpush1.bf16.msra.mxu0 0
    %1162 = vmatprep.subr.bf16.mxu0 0
    %1163 = vmatpush1.bf16.msra.mxu0 0
    %1164 = vmatprep.subr.bf16.mxu0 0
    %1165 = vmatpush1.bf16.msra.mxu0 0
    %1166 = vmatprep.subr.bf16.mxu0 0
    %1167 = vmatpush1.bf16.msra.mxu0 0
    %1168 = vmatprep.subr.bf16.mxu0 0
    %1169 = vmatpush1.bf16.msra.mxu0 0
    %1170 = vmatprep.subr.bf16.mxu0 0
    %1171 = vmatpush1.bf16.msra.mxu0 0
    %1172 = vmatprep.subr.bf16.mxu0 0
    %1173 = vmatpush1.bf16.msra.mxu0 0
    %1174 = vmatprep.subr.bf16.mxu0 0
    %1175 = vmatpush1.bf16.msra.mxu0 0
    %1176 = vmatprep.subr.bf16.mxu0 0
    %1177 = vmatpush1.bf16.msra.mxu0 0
    %1178 = vmatprep.subr.bf16.mxu0 0
    %1179 = vmatpush1.bf16.msra.mxu0 0
    %1180 = vmatprep.subr.bf16.mxu0 0
    %1181 = vmatpush1.bf16.msra.mxu0 0
    %1182 = vmatprep.subr.bf16.mxu0 0
    %1183 = vmatpush1.bf16.msra.mxu0 0
    %1184 = vmatprep.subr.bf16.mxu0 0
    %1185 = vmatpush1.bf16.msra.mxu0 0
    %1186 = vmatprep.subr.bf16.mxu0 0
    %1187 = vmatpush1.bf16.msra.mxu0 0
    %1188 = vmatprep.subr.bf16.mxu0 0
    %1189 = vmatpush1.bf16.msra.mxu0 0
    %1190 = vmatprep.mubr.bf16.mxu0 0
    %1191 = vmatmul.mubr.bf16.gmra.mrb[0].mxu0 %v1153
    %v1192 = vpop.f32.mrb[0].mxu0
    %v1193 = vadd.f32 0.0, %v1192
    %v1194 = vpop.f32.mrb[0].mxu0
    %v1195 = vpop.f32.mrb[0].mxu0
    %v1196 = vpop.f32.mrb[0].mxu0
    %1197 = vdwg.mxu0
    %1198 = vrot.lane.b32.xlu0 %v480, 80
    %v1199 = vpop.permute.xlu0 %1198
    %v1201 = vsel %vm454, %v1149, 0
    %v1204 = vsel %vm484, %v1199, 0
    %1206 = vmatprep.subr.bf16.mxu0 0
    %1207 = vmatpush1.bf16.msra.mxu0 %v1204
    %1208 = vmatprep.subr.bf16.mxu0 0
    %1209 = vmatpush1.bf16.msra.mxu0 0
    %1210 = vmatprep.subr.bf16.mxu0 0
    %1211 = vmatpush1.bf16.msra.mxu0 0
    %1212 = vmatprep.subr.bf16.mxu0 0
    %1213 = vmatpush1.bf16.msra.mxu0 0
    %1214 = vmatprep.subr.bf16.mxu0 0
    %1215 = vmatpush1.bf16.msra.mxu0 0
    %1216 = vmatprep.subr.bf16.mxu0 0
    %1217 = vmatpush1.bf16.msra.mxu0 0
    %1218 = vmatprep.subr.bf16.mxu0 0
    %1219 = vmatpush1.bf16.msra.mxu0 0
    %1220 = vmatprep.subr.bf16.mxu0 0
    %1221 = vmatpush1.bf16.msra.mxu0 0
    %1222 = vmatprep.subr.bf16.mxu0 0
    %1223 = vmatpush1.bf16.msra.mxu0 0
    %1224 = vmatprep.subr.bf16.mxu0 0
    %1225 = vmatpush1.bf16.msra.mxu0 0
    %1226 = vmatprep.subr.bf16.mxu0 0
    %1227 = vmatpush1.bf16.msra.mxu0 0
    %1228 = vmatprep.subr.bf16.mxu0 0
    %1229 = vmatpush1.bf16.msra.mxu0 0
    %1230 = vmatprep.subr.bf16.mxu0 0
    %1231 = vmatpush1.bf16.msra.mxu0 0
    %1232 = vmatprep.subr.bf16.mxu0 0
    %1233 = vmatpush1.bf16.msra.mxu0 0
    %1234 = vmatprep.subr.bf16.mxu0 0
    %1235 = vmatpush1.bf16.msra.mxu0 0
    %1236 = vmatprep.subr.bf16.mxu0 0
    %1237 = vmatpush1.bf16.msra.mxu0 0
    %1238 = vmatprep.mubr.bf16.mxu0 0
    %1239 = vmatmul.mubr.bf16.gmra.mrb[0].mxu0 %v1201
    %v1240 = vpop.f32.mrb[0].mxu0
    %v1241 = vadd.f32 0.0, %v1240
    %v1242 = vpop.f32.mrb[0].mxu0
    %v1243 = vpop.f32.mrb[0].mxu0
    %v1244 = vpop.f32.mrb[0].mxu0
    %1245 = vdwg.mxu0
    %1246 = vrot.lane.b32.xlu0 %v355, 64
    %v1247 = vpop.permute.xlu0 %1246
    %1248 = vrot.lane.b32.xlu0 %v357, 64
    %v1249 = vpop.permute.xlu0 %1248
    %v1251 = vsel %vm359, %v1247, 0
    %v1254 = vsel %vm359, %v1249, 0
    %1256 = vmatprep.subr.bf16.mxu0 0
    %1257 = vmatpush1.bf16.xpose.msra.mxu0 %v1254
    %1258 = vmatprep.subr.bf16.mxu0 0
    %1259 = vmatpush1.bf16.xpose.msra.mxu0 0
    %1260 = vmatprep.subr.bf16.mxu0 0
    %1261 = vmatpush1.bf16.xpose.msra.mxu0 0
    %1262 = vmatprep.subr.bf16.mxu0 0
    %1263 = vmatpush1.bf16.xpose.msra.mxu0 0
    %1264 = vmatprep.subr.bf16.mxu0 0
    %1265 = vmatpush1.bf16.xpose.msra.mxu0 0
    %1266 = vmatprep.subr.bf16.mxu0 0
    %1267 = vmatpush1.bf16.xpose.msra.mxu0 0
    %1268 = vmatprep.subr.bf16.mxu0 0
    %1269 = vmatpush1.bf16.xpose.msra.mxu0 0
    %1270 = vmatprep.subr.bf16.mxu0 0
    %1271 = vmatpush1.bf16.xpose.msra.mxu0 0
    %1272 = vmatprep.subr.bf16.mxu0 0
    %1273 = vmatpush1.bf16.xpose.msra.mxu0 0
    %1274 = vmatprep.subr.bf16.mxu0 0
    %1275 = vmatpush1.bf16.xpose.msra.mxu0 0
    %1276 = vmatprep.subr.bf16.mxu0 0
    %1277 = vmatpush1.bf16.xpose.msra.mxu0 0
    %1278 = vmatprep.subr.bf16.mxu0 0
    %1279 = vmatpush1.bf16.xpose.msra.mxu0 0
    %1280 = vmatprep.subr.bf16.mxu0 0
    %1281 = vmatpush1.bf16.xpose.msra.mxu0 0
    %1282 = vmatprep.subr.bf16.mxu0 0
    %1283 = vmatpush1.bf16.xpose.msra.mxu0 0
    %1284 = vmatprep.subr.bf16.mxu0 0
    %1285 = vmatpush1.bf16.xpose.msra.mxu0 0
    %1286 = vmatprep.subr.bf16.mxu0 0
    %1287 = vmatpush1.bf16.xpose.msra.mxu0 0
    %1288 = vmatprep.mubr.bf16.mxu0 0
    %1289 = vmatmul.mubr.bf16.gmra.mrb[0].mxu0 %v1251
    %v1290 = vpop.f32.mrb[0].mxu0
    %v1291 = vadd.f32 0.0, %v1290
    %v1292 = vpop.f32.mrb[0].mxu0
    %v1293 = vpop.f32.mrb[0].mxu0
    %v1294 = vpop.f32.mrb[0].mxu0
    %1295 = vdwg.mxu0
    %1296 = vrot.lane.b32.xlu0 %v356, 64
    %v1297 = vpop.permute.xlu0 %1296
    %1298 = vrot.lane.b32.xlu0 %v358, 64
    %v1299 = vpop.permute.xlu0 %1298
    %v1301 = vsel %vm359, %v1297, 0
    %v1304 = vsel %vm359, %v1299, 0
    %1306 = vmatprep.subr.bf16.mxu0 0
    %1307 = vmatpush1.bf16.xpose.msra.mxu0 %v1304
    %1308 = vmatprep.subr.bf16.mxu0 0
    %1309 = vmatpush1.bf16.xpose.msra.mxu0 0
    %1310 = vmatprep.subr.bf16.mxu0 0
    %1311 = vmatpush1.bf16.xpose.msra.mxu0 0
    %1312 = vmatprep.subr.bf16.mxu0 0
    %1313 = vmatpush1.bf16.xpose.msra.mxu0 0
    %1314 = vmatprep.subr.bf16.mxu0 0
    %1315 = vmatpush1.bf16.xpose.msra.mxu0 0
    %1316 = vmatprep.subr.bf16.mxu0 0
    %1317 = vmatpush1.bf16.xpose.msra.mxu0 0
    %1318 = vmatprep.subr.bf16.mxu0 0
    %1319 = vmatpush1.bf16.xpose.msra.mxu0 0
    %1320 = vmatprep.subr.bf16.mxu0 0
    %1321 = vmatpush1.bf16.xpose.msra.mxu0 0
    %1322 = vmatprep.subr.bf16.mxu0 0
    %1323 = vmatpush1.bf16.xpose.msra.mxu0 0
    %1324 = vmatprep.subr.bf16.mxu0 0
    %1325 = vmatpush1.bf16.xpose.msra.mxu0 0
    %1326 = vmatprep.subr.bf16.mxu0 0
    %1327 = vmatpush1.bf16.xpose.msra.mxu0 0
    %1328 = vmatprep.subr.bf16.mxu0 0
    %1329 = vmatpush1.bf16.xpose.msra.mxu0 0
    %1330 = vmatprep.subr.bf16.mxu0 0
    %1331 = vmatpush1.bf16.xpose.msra.mxu0 0
    %1332 = vmatprep.subr.bf16.mxu0 0
    %1333 = vmatpush1.bf16.xpose.msra.mxu0 0
    %1334 = vmatprep.subr.bf16.mxu0 0
    %1335 = vmatpush1.bf16.xpose.msra.mxu0 0
    %1336 = vmatprep.subr.bf16.mxu0 0
    %1337 = vmatpush1.bf16.xpose.msra.mxu0 0
    %1338 = vmatprep.mubr.bf16.mxu0 0
    %1339 = vmatmul.mubr.bf16.gmra.mrb[0].mxu0 %v1301
    %v1340 = vpop.f32.mrb[0].mxu0
    %v1341 = vadd.f32 0.0, %v1340
    %v1342 = vpop.f32.mrb[0].mxu0
    %v1343 = vpop.f32.mrb[0].mxu0
    %v1344 = vpop.f32.mrb[0].mxu0
    %1345 = vdwg.mxu0
    %v1346 = vmul.f32 %v1291, 0.25
    %v1347 = vmul.f32 %v1341, 0.25
    %v1348 = vsel %vm454, %v1346, -inf
    %1349 = vmax.xlane.f32.xlu0 %v1348
    %v1350 = vpop.xlane.xlu0 %1349
    %v1351 = vsel %vm454, %v1347, -inf
    %1352 = vmax.xlane.f32.xlu0 %v1351
    %v1353 = vpop.xlane.xlu0 %1352
    %v1354 = vsub.f32 %v1346, %v1350
    %v1355 = vsub.f32 %v1347, %v1353
    %v1356 = vmul.f32 %v1354, 1.442695
    %v1357 = vpow.pop %v1356
    %v1358 = vmul.f32 %v1355, 1.442695
    %v1359 = vpow.pop %v1358
    %v1360 = vsel %vm454, %v1357, 0.0
    %1361 = vadd.xlane.f32.xlu0 %v1360
    %v1362 = vpop.xlane.xlu0 %1361
    %v1363 = vsel %vm454, %v1359, 0.0
    %1364 = vadd.xlane.f32.xlu0 %v1363
    %v1365 = vpop.xlane.xlu0 %1364
    %v1366 = vrcp.pop %v1362
    %v1367 = vrcp.pop %v1365
    %v1368 = vmul.f32 %v1357, %v1366
    %v1369 = vmul.f32 %v1359, %v1367
    %v1370 = vpack.c.bf16 %v1368, %v1368
    %v1371 = vpack.c.bf16 %v1369, %v1369
    %1372 = vrot.lane.b32.xlu0 %v479, 64
    %v1373 = vpop.permute.xlu0 %1372
    %v1375 = vsel %vm454, %v1370, 0
    %v1378 = vsel %vm484, %v1373, 0
    %1380 = vmatprep.subr.bf16.mxu0 0
    %1381 = vmatpush1.bf16.msra.mxu0 %v1378
    %1382 = vmatprep.subr.bf16.mxu0 0
    %1383 = vmatpush1.bf16.msra.mxu0 0
    %1384 = vmatprep.subr.bf16.mxu0 0
    %1385 = vmatpush1.bf16.msra.mxu0 0
    %1386 = vmatprep.subr.bf16.mxu0 0
    %1387 = vmatpush1.bf16.msra.mxu0 0
    %1388 = vmatprep.subr.bf16.mxu0 0
    %1389 = vmatpush1.bf16.msra.mxu0 0
    %1390 = vmatprep.subr.bf16.mxu0 0
    %1391 = vmatpush1.bf16.msra.mxu0 0
    %1392 = vmatprep.subr.bf16.mxu0 0
    %1393 = vmatpush1.bf16.msra.mxu0 0
    %1394 = vmatprep.subr.bf16.mxu0 0
    %1395 = vmatpush1.bf16.msra.mxu0 0
    %1396 = vmatprep.subr.bf16.mxu0 0
    %1397 = vmatpush1.bf16.msra.mxu0 0
    %1398 = vmatprep.subr.bf16.mxu0 0
    %1399 = vmatpush1.bf16.msra.mxu0 0
    %1400 = vmatprep.subr.bf16.mxu0 0
    %1401 = vmatpush1.bf16.msra.mxu0 0
    %1402 = vmatprep.subr.bf16.mxu0 0
    %1403 = vmatpush1.bf16.msra.mxu0 0
    %1404 = vmatprep.subr.bf16.mxu0 0
    %1405 = vmatpush1.bf16.msra.mxu0 0
    %1406 = vmatprep.subr.bf16.mxu0 0
    %1407 = vmatpush1.bf16.msra.mxu0 0
    %1408 = vmatprep.subr.bf16.mxu0 0
    %1409 = vmatpush1.bf16.msra.mxu0 0
    %1410 = vmatprep.subr.bf16.mxu0 0
    %1411 = vmatpush1.bf16.msra.mxu0 0
    %1412 = vmatprep.mubr.bf16.mxu0 0
    %1413 = vmatmul.mubr.bf16.gmra.mrb[0].mxu0 %v1375
    %v1414 = vpop.f32.mrb[0].mxu0
    %v1415 = vadd.f32 0.0, %v1414
    %v1416 = vpop.f32.mrb[0].mxu0
    %v1417 = vpop.f32.mrb[0].mxu0
    %v1418 = vpop.f32.mrb[0].mxu0
    %1419 = vdwg.mxu0
    %1420 = vrot.lane.b32.xlu0 %v480, 64
    %v1421 = vpop.permute.xlu0 %1420
    %v1423 = vsel %vm454, %v1371, 0
    %v1426 = vsel %vm484, %v1421, 0
    %1428 = vmatprep.subr.bf16.mxu0 0
    %1429 = vmatpush1.bf16.msra.mxu0 %v1426
    %1430 = vmatprep.subr.bf16.mxu0 0
    %1431 = vmatpush1.bf16.msra.mxu0 0
    %1432 = vmatprep.subr.bf16.mxu0 0
    %1433 = vmatpush1.bf16.msra.mxu0 0
    %1434 = vmatprep.subr.bf16.mxu0 0
    %1435 = vmatpush1.bf16.msra.mxu0 0
    %1436 = vmatprep.subr.bf16.mxu0 0
    %1437 = vmatpush1.bf16.msra.mxu0 0
    %1438 = vmatprep.subr.bf16.mxu0 0
    %1439 = vmatpush1.bf16.msra.mxu0 0
    %1440 = vmatprep.subr.bf16.mxu0 0
    %1441 = vmatpush1.bf16.msra.mxu0 0
    %1442 = vmatprep.subr.bf16.mxu0 0
    %1443 = vmatpush1.bf16.msra.mxu0 0
    %1444 = vmatprep.subr.bf16.mxu0 0
    %1445 = vmatpush1.bf16.msra.mxu0 0
    %1446 = vmatprep.subr.bf16.mxu0 0
    %1447 = vmatpush1.bf16.msra.mxu0 0
    %1448 = vmatprep.subr.bf16.mxu0 0
    %1449 = vmatpush1.bf16.msra.mxu0 0
    %1450 = vmatprep.subr.bf16.mxu0 0
    %1451 = vmatpush1.bf16.msra.mxu0 0
    %1452 = vmatprep.subr.bf16.mxu0 0
    %1453 = vmatpush1.bf16.msra.mxu0 0
    %1454 = vmatprep.subr.bf16.mxu0 0
    %1455 = vmatpush1.bf16.msra.mxu0 0
    %1456 = vmatprep.subr.bf16.mxu0 0
    %1457 = vmatpush1.bf16.msra.mxu0 0
    %1458 = vmatprep.subr.bf16.mxu0 0
    %1459 = vmatpush1.bf16.msra.mxu0 0
    %1460 = vmatprep.mubr.bf16.mxu0 0
    %1461 = vmatmul.mubr.bf16.gmra.mrb[0].mxu0 %v1423
    %v1462 = vpop.f32.mrb[0].mxu0
    %v1463 = vadd.f32 0.0, %v1462
    %v1464 = vpop.f32.mrb[0].mxu0
    %v1465 = vpop.f32.mrb[0].mxu0
    %v1466 = vpop.f32.mrb[0].mxu0
    %1467 = vdwg.mxu0
    %1468 = vrot.lane.b32.xlu0 %v355, 48
    %v1469 = vpop.permute.xlu0 %1468
    %1470 = vrot.lane.b32.xlu0 %v357, 48
    %v1471 = vpop.permute.xlu0 %1470
    %v1473 = vsel %vm359, %v1469, 0
    %v1476 = vsel %vm359, %v1471, 0
    %1478 = vmatprep.subr.bf16.mxu0 0
    %1479 = vmatpush1.bf16.xpose.msra.mxu0 %v1476
    %1480 = vmatprep.subr.bf16.mxu0 0
    %1481 = vmatpush1.bf16.xpose.msra.mxu0 0
    %1482 = vmatprep.subr.bf16.mxu0 0
    %1483 = vmatpush1.bf16.xpose.msra.mxu0 0
    %1484 = vmatprep.subr.bf16.mxu0 0
    %1485 = vmatpush1.bf16.xpose.msra.mxu0 0
    %1486 = vmatprep.subr.bf16.mxu0 0
    %1487 = vmatpush1.bf16.xpose.msra.mxu0 0
    %1488 = vmatprep.subr.bf16.mxu0 0
    %1489 = vmatpush1.bf16.xpose.msra.mxu0 0
    %1490 = vmatprep.subr.bf16.mxu0 0
    %1491 = vmatpush1.bf16.xpose.msra.mxu0 0
    %1492 = vmatprep.subr.bf16.mxu0 0
    %1493 = vmatpush1.bf16.xpose.msra.mxu0 0
    %1494 = vmatprep.subr.bf16.mxu0 0
    %1495 = vmatpush1.bf16.xpose.msra.mxu0 0
    %1496 = vmatprep.subr.bf16.mxu0 0
    %1497 = vmatpush1.bf16.xpose.msra.mxu0 0
    %1498 = vmatprep.subr.bf16.mxu0 0
    %1499 = vmatpush1.bf16.xpose.msra.mxu0 0
    %1500 = vmatprep.subr.bf16.mxu0 0
    %1501 = vmatpush1.bf16.xpose.msra.mxu0 0
    %1502 = vmatprep.subr.bf16.mxu0 0
    %1503 = vmatpush1.bf16.xpose.msra.mxu0 0
    %1504 = vmatprep.subr.bf16.mxu0 0
    %1505 = vmatpush1.bf16.xpose.msra.mxu0 0
    %1506 = vmatprep.subr.bf16.mxu0 0
    %1507 = vmatpush1.bf16.xpose.msra.mxu0 0
    %1508 = vmatprep.subr.bf16.mxu0 0
    %1509 = vmatpush1.bf16.xpose.msra.mxu0 0
    %1510 = vmatprep.mubr.bf16.mxu0 0
    %1511 = vmatmul.mubr.bf16.gmra.mrb[0].mxu0 %v1473
    %v1512 = vpop.f32.mrb[0].mxu0
    %v1513 = vadd.f32 0.0, %v1512
    %v1514 = vpop.f32.mrb[0].mxu0
    %v1515 = vpop.f32.mrb[0].mxu0
    %v1516 = vpop.f32.mrb[0].mxu0
    %1517 = vdwg.mxu0
    %1518 = vrot.lane.b32.xlu0 %v356, 48
    %v1519 = vpop.permute.xlu0 %1518
    %1520 = vrot.lane.b32.xlu0 %v358, 48
    %v1521 = vpop.permute.xlu0 %1520
    %v1523 = vsel %vm359, %v1519, 0
    %v1526 = vsel %vm359, %v1521, 0
    %1528 = vmatprep.subr.bf16.mxu0 0
    %1529 = vmatpush1.bf16.xpose.msra.mxu0 %v1526
    %1530 = vmatprep.subr.bf16.mxu0 0
    %1531 = vmatpush1.bf16.xpose.msra.mxu0 0
    %1532 = vmatprep.subr.bf16.mxu0 0
    %1533 = vmatpush1.bf16.xpose.msra.mxu0 0
    %1534 = vmatprep.subr.bf16.mxu0 0
    %1535 = vmatpush1.bf16.xpose.msra.mxu0 0
    %1536 = vmatprep.subr.bf16.mxu0 0
    %1537 = vmatpush1.bf16.xpose.msra.mxu0 0
    %1538 = vmatprep.subr.bf16.mxu0 0
    %1539 = vmatpush1.bf16.xpose.msra.mxu0 0
    %1540 = vmatprep.subr.bf16.mxu0 0
    %1541 = vmatpush1.bf16.xpose.msra.mxu0 0
    %1542 = vmatprep.subr.bf16.mxu0 0
    %1543 = vmatpush1.bf16.xpose.msra.mxu0 0
    %1544 = vmatprep.subr.bf16.mxu0 0
    %1545 = vmatpush1.bf16.xpose.msra.mxu0 0
    %1546 = vmatprep.subr.bf16.mxu0 0
    %1547 = vmatpush1.bf16.xpose.msra.mxu0 0
    %1548 = vmatprep.subr.bf16.mxu0 0
    %1549 = vmatpush1.bf16.xpose.msra.mxu0 0
    %1550 = vmatprep.subr.bf16.mxu0 0
    %1551 = vmatpush1.bf16.xpose.msra.mxu0 0
    %1552 = vmatprep.subr.bf16.mxu0 0
    %1553 = vmatpush1.bf16.xpose.msra.mxu0 0
    %1554 = vmatprep.subr.bf16.mxu0 0
    %1555 = vmatpush1.bf16.xpose.msra.mxu0 0
    %1556 = vmatprep.subr.bf16.mxu0 0
    %1557 = vmatpush1.bf16.xpose.msra.mxu0 0
    %1558 = vmatprep.subr.bf16.mxu0 0
    %1559 = vmatpush1.bf16.xpose.msra.mxu0 0
    %1560 = vmatprep.mubr.bf16.mxu0 0
    %1561 = vmatmul.mubr.bf16.gmra.mrb[0].mxu0 %v1523
    %v1562 = vpop.f32.mrb[0].mxu0
    %v1563 = vadd.f32 0.0, %v1562
    %v1564 = vpop.f32.mrb[0].mxu0
    %v1565 = vpop.f32.mrb[0].mxu0
    %v1566 = vpop.f32.mrb[0].mxu0
    %1567 = vdwg.mxu0
    %v1568 = vmul.f32 %v1513, 0.25
    %v1569 = vmul.f32 %v1563, 0.25
    %v1570 = vsel %vm454, %v1568, -inf
    %1571 = vmax.xlane.f32.xlu0 %v1570
    %v1572 = vpop.xlane.xlu0 %1571
    %v1573 = vsel %vm454, %v1569, -inf
    %1574 = vmax.xlane.f32.xlu0 %v1573
    %v1575 = vpop.xlane.xlu0 %1574
    %v1576 = vsub.f32 %v1568, %v1572
    %v1577 = vsub.f32 %v1569, %v1575
    %v1578 = vmul.f32 %v1576, 1.442695
    %v1579 = vpow.pop %v1578
    %v1580 = vmul.f32 %v1577, 1.442695
    %v1581 = vpow.pop %v1580
    %v1582 = vsel %vm454, %v1579, 0.0
    %1583 = vadd.xlane.f32.xlu0 %v1582
    %v1584 = vpop.xlane.xlu0 %1583
    %v1585 = vsel %vm454, %v1581, 0.0
    %1586 = vadd.xlane.f32.xlu0 %v1585
    %v1587 = vpop.xlane.xlu0 %1586
    %v1588 = vrcp.pop %v1584
    %v1589 = vrcp.pop %v1587
    %v1590 = vmul.f32 %v1579, %v1588
    %v1591 = vmul.f32 %v1581, %v1589
    %v1592 = vpack.c.bf16 %v1590, %v1590
    %v1593 = vpack.c.bf16 %v1591, %v1591
    %1594 = vrot.lane.b32.xlu0 %v479, 48
    %v1595 = vpop.permute.xlu0 %1594
    %v1597 = vsel %vm454, %v1592, 0
    %v1600 = vsel %vm484, %v1595, 0
    %1602 = vmatprep.subr.bf16.mxu0 0
    %1603 = vmatpush1.bf16.msra.mxu0 %v1600
    %1604 = vmatprep.subr.bf16.mxu0 0
    %1605 = vmatpush1.bf16.msra.mxu0 0
    %1606 = vmatprep.subr.bf16.mxu0 0
    %1607 = vmatpush1.bf16.msra.mxu0 0
    %1608 = vmatprep.subr.bf16.mxu0 0
    %1609 = vmatpush1.bf16.msra.mxu0 0
    %1610 = vmatprep.subr.bf16.mxu0 0
    %1611 = vmatpush1.bf16.msra.mxu0 0
    %1612 = vmatprep.subr.bf16.mxu0 0
    %1613 = vmatpush1.bf16.msra.mxu0 0
    %1614 = vmatprep.subr.bf16.mxu0 0
    %1615 = vmatpush1.bf16.msra.mxu0 0
    %1616 = vmatprep.subr.bf16.mxu0 0
    %1617 = vmatpush1.bf16.msra.mxu0 0
    %1618 = vmatprep.subr.bf16.mxu0 0
    %1619 = vmatpush1.bf16.msra.mxu0 0
    %1620 = vmatprep.subr.bf16.mxu0 0
    %1621 = vmatpush1.bf16.msra.mxu0 0
    %1622 = vmatprep.subr.bf16.mxu0 0
    %1623 = vmatpush1.bf16.msra.mxu0 0
    %1624 = vmatprep.subr.bf16.mxu0 0
    %1625 = vmatpush1.bf16.msra.mxu0 0
    %1626 = vmatprep.subr.bf16.mxu0 0
    %1627 = vmatpush1.bf16.msra.mxu0 0
    %1628 = vmatprep.subr.bf16.mxu0 0
    %1629 = vmatpush1.bf16.msra.mxu0 0
    %1630 = vmatprep.subr.bf16.mxu0 0
    %1631 = vmatpush1.bf16.msra.mxu0 0
    %1632 = vmatprep.subr.bf16.mxu0 0
    %1633 = vmatpush1.bf16.msra.mxu0 0
    %1634 = vmatprep.mubr.bf16.mxu0 0
    %1635 = vmatmul.mubr.bf16.gmra.mrb[0].mxu0 %v1597
    %v1636 = vpop.f32.mrb[0].mxu0
    %v1637 = vadd.f32 0.0, %v1636
    %v1638 = vpop.f32.mrb[0].mxu0
    %v1639 = vpop.f32.mrb[0].mxu0
    %v1640 = vpop.f32.mrb[0].mxu0
    %1641 = vdwg.mxu0
    %1642 = vrot.lane.b32.xlu0 %v480, 48
    %v1643 = vpop.permute.xlu0 %1642
    %v1645 = vsel %vm454, %v1593, 0
    %v1648 = vsel %vm484, %v1643, 0
    %1650 = vmatprep.subr.bf16.mxu0 0
    %1651 = vmatpush1.bf16.msra.mxu0 %v1648
    %1652 = vmatprep.subr.bf16.mxu0 0
    %1653 = vmatpush1.bf16.msra.mxu0 0
    %1654 = vmatprep.subr.bf16.mxu0 0
    %1655 = vmatpush1.bf16.msra.mxu0 0
    %1656 = vmatprep.subr.bf16.mxu0 0
    %1657 = vmatpush1.bf16.msra.mxu0 0
    %1658 = vmatprep.subr.bf16.mxu0 0
    %1659 = vmatpush1.bf16.msra.mxu0 0
    %1660 = vmatprep.subr.bf16.mxu0 0
    %1661 = vmatpush1.bf16.msra.mxu0 0
    %1662 = vmatprep.subr.bf16.mxu0 0
    %1663 = vmatpush1.bf16.msra.mxu0 0
    %1664 = vmatprep.subr.bf16.mxu0 0
    %1665 = vmatpush1.bf16.msra.mxu0 0
    %1666 = vmatprep.subr.bf16.mxu0 0
    %1667 = vmatpush1.bf16.msra.mxu0 0
    %1668 = vmatprep.subr.bf16.mxu0 0
    %1669 = vmatpush1.bf16.msra.mxu0 0
    %1670 = vmatprep.subr.bf16.mxu0 0
    %1671 = vmatpush1.bf16.msra.mxu0 0
    %1672 = vmatprep.subr.bf16.mxu0 0
    %1673 = vmatpush1.bf16.msra.mxu0 0
    %1674 = vmatprep.subr.bf16.mxu0 0
    %1675 = vmatpush1.bf16.msra.mxu0 0
    %1676 = vmatprep.subr.bf16.mxu0 0
    %1677 = vmatpush1.bf16.msra.mxu0 0
    %1678 = vmatprep.subr.bf16.mxu0 0
    %1679 = vmatpush1.bf16.msra.mxu0 0
    %1680 = vmatprep.subr.bf16.mxu0 0
    %1681 = vmatpush1.bf16.msra.mxu0 0
    %1682 = vmatprep.mubr.bf16.mxu0 0
    %1683 = vmatmul.mubr.bf16.gmra.mrb[0].mxu0 %v1645
    %v1684 = vpop.f32.mrb[0].mxu0
    %v1685 = vadd.f32 0.0, %v1684
    %v1686 = vpop.f32.mrb[0].mxu0
    %v1687 = vpop.f32.mrb[0].mxu0
    %v1688 = vpop.f32.mrb[0].mxu0
    %1689 = vdwg.mxu0
    %1690 = vrot.lane.b32.xlu0 %v355, 32
    %v1691 = vpop.permute.xlu0 %1690
    %1692 = vrot.lane.b32.xlu0 %v357, 32
    %v1693 = vpop.permute.xlu0 %1692
    %v1695 = vsel %vm359, %v1691, 0
    %v1698 = vsel %vm359, %v1693, 0
    %1700 = vmatprep.subr.bf16.mxu0 0
    %1701 = vmatpush1.bf16.xpose.msra.mxu0 %v1698
    %1702 = vmatprep.subr.bf16.mxu0 0
    %1703 = vmatpush1.bf16.xpose.msra.mxu0 0
    %1704 = vmatprep.subr.bf16.mxu0 0
    %1705 = vmatpush1.bf16.xpose.msra.mxu0 0
    %1706 = vmatprep.subr.bf16.mxu0 0
    %1707 = vmatpush1.bf16.xpose.msra.mxu0 0
    %1708 = vmatprep.subr.bf16.mxu0 0
    %1709 = vmatpush1.bf16.xpose.msra.mxu0 0
    %1710 = vmatprep.subr.bf16.mxu0 0
    %1711 = vmatpush1.bf16.xpose.msra.mxu0 0
    %1712 = vmatprep.subr.bf16.mxu0 0
    %1713 = vmatpush1.bf16.xpose.msra.mxu0 0
    %1714 = vmatprep.subr.bf16.mxu0 0
    %1715 = vmatpush1.bf16.xpose.msra.mxu0 0
    %1716 = vmatprep.subr.bf16.mxu0 0
    %1717 = vmatpush1.bf16.xpose.msra.mxu0 0
    %1718 = vmatprep.subr.bf16.mxu0 0
    %1719 = vmatpush1.bf16.xpose.msra.mxu0 0
    %1720 = vmatprep.subr.bf16.mxu0 0
    %1721 = vmatpush1.bf16.xpose.msra.mxu0 0
    %1722 = vmatprep.subr.bf16.mxu0 0
    %1723 = vmatpush1.bf16.xpose.msra.mxu0 0
    %1724 = vmatprep.subr.bf16.mxu0 0
    %1725 = vmatpush1.bf16.xpose.msra.mxu0 0
    %1726 = vmatprep.subr.bf16.mxu0 0
    %1727 = vmatpush1.bf16.xpose.msra.mxu0 0
    %1728 = vmatprep.subr.bf16.mxu0 0
    %1729 = vmatpush1.bf16.xpose.msra.mxu0 0
    %1730 = vmatprep.subr.bf16.mxu0 0
    %1731 = vmatpush1.bf16.xpose.msra.mxu0 0
    %1732 = vmatprep.mubr.bf16.mxu0 0
    %1733 = vmatmul.mubr.bf16.gmra.mrb[0].mxu0 %v1695
    %v1734 = vpop.f32.mrb[0].mxu0
    %v1735 = vadd.f32 0.0, %v1734
    %v1736 = vpop.f32.mrb[0].mxu0
    %v1737 = vpop.f32.mrb[0].mxu0
    %v1738 = vpop.f32.mrb[0].mxu0
    %1739 = vdwg.mxu0
    %1740 = vrot.lane.b32.xlu0 %v356, 32
    %v1741 = vpop.permute.xlu0 %1740
    %1742 = vrot.lane.b32.xlu0 %v358, 32
    %v1743 = vpop.permute.xlu0 %1742
    %v1745 = vsel %vm359, %v1741, 0
    %v1748 = vsel %vm359, %v1743, 0
    %1750 = vmatprep.subr.bf16.mxu0 0
    %1751 = vmatpush1.bf16.xpose.msra.mxu0 %v1748
    %1752 = vmatprep.subr.bf16.mxu0 0
    %1753 = vmatpush1.bf16.xpose.msra.mxu0 0
    %1754 = vmatprep.subr.bf16.mxu0 0
    %1755 = vmatpush1.bf16.xpose.msra.mxu0 0
    %1756 = vmatprep.subr.bf16.mxu0 0
    %1757 = vmatpush1.bf16.xpose.msra.mxu0 0
    %1758 = vmatprep.subr.bf16.mxu0 0
    %1759 = vmatpush1.bf16.xpose.msra.mxu0 0
    %1760 = vmatprep.subr.bf16.mxu0 0
    %1761 = vmatpush1.bf16.xpose.msra.mxu0 0
    %1762 = vmatprep.subr.bf16.mxu0 0
    %1763 = vmatpush1.bf16.xpose.msra.mxu0 0
    %1764 = vmatprep.subr.bf16.mxu0 0
    %1765 = vmatpush1.bf16.xpose.msra.mxu0 0
    %1766 = vmatprep.subr.bf16.mxu0 0
    %1767 = vmatpush1.bf16.xpose.msra.mxu0 0
    %1768 = vmatprep.subr.bf16.mxu0 0
    %1769 = vmatpush1.bf16.xpose.msra.mxu0 0
    %1770 = vmatprep.subr.bf16.mxu0 0
    %1771 = vmatpush1.bf16.xpose.msra.mxu0 0
    %1772 = vmatprep.subr.bf16.mxu0 0
    %1773 = vmatpush1.bf16.xpose.msra.mxu0 0
    %1774 = vmatprep.subr.bf16.mxu0 0
    %1775 = vmatpush1.bf16.xpose.msra.mxu0 0
    %1776 = vmatprep.subr.bf16.mxu0 0
    %1777 = vmatpush1.bf16.xpose.msra.mxu0 0
    %1778 = vmatprep.subr.bf16.mxu0 0
    %1779 = vmatpush1.bf16.xpose.msra.mxu0 0
    %1780 = vmatprep.subr.bf16.mxu0 0
    %1781 = vmatpush1.bf16.xpose.msra.mxu0 0
    %1782 = vmatprep.mubr.bf16.mxu0 0
    %1783 = vmatmul.mubr.bf16.gmra.mrb[0].mxu0 %v1745
    %v1784 = vpop.f32.mrb[0].mxu0
    %v1785 = vadd.f32 0.0, %v1784
    %v1786 = vpop.f32.mrb[0].mxu0
    %v1787 = vpop.f32.mrb[0].mxu0
    %v1788 = vpop.f32.mrb[0].mxu0
    %1789 = vdwg.mxu0
    %v1790 = vmul.f32 %v1735, 0.25
    %v1791 = vmul.f32 %v1785, 0.25
    %v1792 = vsel %vm454, %v1790, -inf
    %1793 = vmax.xlane.f32.xlu0 %v1792
    %v1794 = vpop.xlane.xlu0 %1793
    %v1795 = vsel %vm454, %v1791, -inf
    %1796 = vmax.xlane.f32.xlu0 %v1795
    %v1797 = vpop.xlane.xlu0 %1796
    %v1798 = vsub.f32 %v1790, %v1794
    %v1799 = vsub.f32 %v1791, %v1797
    %v1800 = vmul.f32 %v1798, 1.442695
    %v1801 = vpow.pop %v1800
    %v1802 = vmul.f32 %v1799, 1.442695
    %v1803 = vpow.pop %v1802
    %v1804 = vsel %vm454, %v1801, 0.0
    %1805 = vadd.xlane.f32.xlu0 %v1804
    %v1806 = vpop.xlane.xlu0 %1805
    %v1807 = vsel %vm454, %v1803, 0.0
    %1808 = vadd.xlane.f32.xlu0 %v1807
    %v1809 = vpop.xlane.xlu0 %1808
    %v1810 = vrcp.pop %v1806
    %v1811 = vrcp.pop %v1809
    %v1812 = vmul.f32 %v1801, %v1810
    %v1813 = vmul.f32 %v1803, %v1811
    %v1814 = vpack.c.bf16 %v1812, %v1812
    %v1815 = vpack.c.bf16 %v1813, %v1813
    %1816 = vrot.lane.b32.xlu0 %v479, 32
    %v1817 = vpop.permute.xlu0 %1816
    %v1819 = vsel %vm454, %v1814, 0
    %v1822 = vsel %vm484, %v1817, 0
    %1824 = vmatprep.subr.bf16.mxu0 0
    %1825 = vmatpush1.bf16.msra.mxu0 %v1822
    %1826 = vmatprep.subr.bf16.mxu0 0
    %1827 = vmatpush1.bf16.msra.mxu0 0
    %1828 = vmatprep.subr.bf16.mxu0 0
    %1829 = vmatpush1.bf16.msra.mxu0 0
    %1830 = vmatprep.subr.bf16.mxu0 0
    %1831 = vmatpush1.bf16.msra.mxu0 0
    %1832 = vmatprep.subr.bf16.mxu0 0
    %1833 = vmatpush1.bf16.msra.mxu0 0
    %1834 = vmatprep.subr.bf16.mxu0 0
    %1835 = vmatpush1.bf16.msra.mxu0 0
    %1836 = vmatprep.subr.bf16.mxu0 0
    %1837 = vmatpush1.bf16.msra.mxu0 0
    %1838 = vmatprep.subr.bf16.mxu0 0
    %1839 = vmatpush1.bf16.msra.mxu0 0
    %1840 = vmatprep.subr.bf16.mxu0 0
    %1841 = vmatpush1.bf16.msra.mxu0 0
    %1842 = vmatprep.subr.bf16.mxu0 0
    %1843 = vmatpush1.bf16.msra.mxu0 0
    %1844 = vmatprep.subr.bf16.mxu0 0
    %1845 = vmatpush1.bf16.msra.mxu0 0
    %1846 = vmatprep.subr.bf16.mxu0 0
    %1847 = vmatpush1.bf16.msra.mxu0 0
    %1848 = vmatprep.subr.bf16.mxu0 0
    %1849 = vmatpush1.bf16.msra.mxu0 0
    %1850 = vmatprep.subr.bf16.mxu0 0
    %1851 = vmatpush1.bf16.msra.mxu0 0
    %1852 = vmatprep.subr.bf16.mxu0 0
    %1853 = vmatpush1.bf16.msra.mxu0 0
    %1854 = vmatprep.subr.bf16.mxu0 0
    %1855 = vmatpush1.bf16.msra.mxu0 0
    %1856 = vmatprep.mubr.bf16.mxu0 0
    %1857 = vmatmul.mubr.bf16.gmra.mrb[0].mxu0 %v1819
    %v1858 = vpop.f32.mrb[0].mxu0
    %v1859 = vadd.f32 0.0, %v1858
    %v1860 = vpop.f32.mrb[0].mxu0
    %v1861 = vpop.f32.mrb[0].mxu0
    %v1862 = vpop.f32.mrb[0].mxu0
    %1863 = vdwg.mxu0
    %1864 = vrot.lane.b32.xlu0 %v480, 32
    %v1865 = vpop.permute.xlu0 %1864
    %v1867 = vsel %vm454, %v1815, 0
    %v1870 = vsel %vm484, %v1865, 0
    %1872 = vmatprep.subr.bf16.mxu0 0
    %1873 = vmatpush1.bf16.msra.mxu0 %v1870
    %1874 = vmatprep.subr.bf16.mxu0 0
    %1875 = vmatpush1.bf16.msra.mxu0 0
    %1876 = vmatprep.subr.bf16.mxu0 0
    %1877 = vmatpush1.bf16.msra.mxu0 0
    %1878 = vmatprep.subr.bf16.mxu0 0
    %1879 = vmatpush1.bf16.msra.mxu0 0
    %1880 = vmatprep.subr.bf16.mxu0 0
    %1881 = vmatpush1.bf16.msra.mxu0 0
    %1882 = vmatprep.subr.bf16.mxu0 0
    %1883 = vmatpush1.bf16.msra.mxu0 0
    %1884 = vmatprep.subr.bf16.mxu0 0
    %1885 = vmatpush1.bf16.msra.mxu0 0
    %1886 = vmatprep.subr.bf16.mxu0 0
    %1887 = vmatpush1.bf16.msra.mxu0 0
    %1888 = vmatprep.subr.bf16.mxu0 0
    %1889 = vmatpush1.bf16.msra.mxu0 0
    %1890 = vmatprep.subr.bf16.mxu0 0
    %1891 = vmatpush1.bf16.msra.mxu0 0
    %1892 = vmatprep.subr.bf16.mxu0 0
    %1893 = vmatpush1.bf16.msra.mxu0 0
    %1894 = vmatprep.subr.bf16.mxu0 0
    %1895 = vmatpush1.bf16.msra.mxu0 0
    %1896 = vmatprep.subr.bf16.mxu0 0
    %1897 = vmatpush1.bf16.msra.mxu0 0
    %1898 = vmatprep.subr.bf16.mxu0 0
    %1899 = vmatpush1.bf16.msra.mxu0 0
    %1900 = vmatprep.subr.bf16.mxu0 0
    %1901 = vmatpush1.bf16.msra.mxu0 0
    %1902 = vmatprep.subr.bf16.mxu0 0
    %1903 = vmatpush1.bf16.msra.mxu0 0
    %1904 = vmatprep.mubr.bf16.mxu0 0
    %1905 = vmatmul.mubr.bf16.gmra.mrb[0].mxu0 %v1867
    %v1906 = vpop.f32.mrb[0].mxu0
    %v1907 = vadd.f32 0.0, %v1906
    %v1908 = vpop.f32.mrb[0].mxu0
    %v1909 = vpop.f32.mrb[0].mxu0
    %v1910 = vpop.f32.mrb[0].mxu0
    %1911 = vdwg.mxu0
    %1912 = vrot.lane.b32.xlu0 %v355, 16
    %v1913 = vpop.permute.xlu0 %1912
    %1914 = vrot.lane.b32.xlu0 %v357, 16
    %v1915 = vpop.permute.xlu0 %1914
    %v1917 = vsel %vm359, %v1913, 0
    %v1920 = vsel %vm359, %v1915, 0
    %1922 = vmatprep.subr.bf16.mxu0 0
    %1923 = vmatpush1.bf16.xpose.msra.mxu0 %v1920
    %1924 = vmatprep.subr.bf16.mxu0 0
    %1925 = vmatpush1.bf16.xpose.msra.mxu0 0
    %1926 = vmatprep.subr.bf16.mxu0 0
    %1927 = vmatpush1.bf16.xpose.msra.mxu0 0
    %1928 = vmatprep.subr.bf16.mxu0 0
    %1929 = vmatpush1.bf16.xpose.msra.mxu0 0
    %1930 = vmatprep.subr.bf16.mxu0 0
    %1931 = vmatpush1.bf16.xpose.msra.mxu0 0
    %1932 = vmatprep.subr.bf16.mxu0 0
    %1933 = vmatpush1.bf16.xpose.msra.mxu0 0
    %1934 = vmatprep.subr.bf16.mxu0 0
    %1935 = vmatpush1.bf16.xpose.msra.mxu0 0
    %1936 = vmatprep.subr.bf16.mxu0 0
    %1937 = vmatpush1.bf16.xpose.msra.mxu0 0
    %1938 = vmatprep.subr.bf16.mxu0 0
    %1939 = vmatpush1.bf16.xpose.msra.mxu0 0
    %1940 = vmatprep.subr.bf16.mxu0 0
    %1941 = vmatpush1.bf16.xpose.msra.mxu0 0
    %1942 = vmatprep.subr.bf16.mxu0 0
    %1943 = vmatpush1.bf16.xpose.msra.mxu0 0
    %1944 = vmatprep.subr.bf16.mxu0 0
    %1945 = vmatpush1.bf16.xpose.msra.mxu0 0
    %1946 = vmatprep.subr.bf16.mxu0 0
    %1947 = vmatpush1.bf16.xpose.msra.mxu0 0
    %1948 = vmatprep.subr.bf16.mxu0 0
    %1949 = vmatpush1.bf16.xpose.msra.mxu0 0
    %1950 = vmatprep.subr.bf16.mxu0 0
    %1951 = vmatpush1.bf16.xpose.msra.mxu0 0
    %1952 = vmatprep.subr.bf16.mxu0 0
    %1953 = vmatpush1.bf16.xpose.msra.mxu0 0
    %1954 = vmatprep.mubr.bf16.mxu0 0
    %1955 = vmatmul.mubr.bf16.gmra.mrb[0].mxu0 %v1917
    %v1956 = vpop.f32.mrb[0].mxu0
    %v1957 = vadd.f32 0.0, %v1956
    %v1958 = vpop.f32.mrb[0].mxu0
    %v1959 = vpop.f32.mrb[0].mxu0
    %v1960 = vpop.f32.mrb[0].mxu0
    %1961 = vdwg.mxu0
    %1962 = vrot.lane.b32.xlu0 %v356, 16
    %v1963 = vpop.permute.xlu0 %1962
    %1964 = vrot.lane.b32.xlu0 %v358, 16
    %v1965 = vpop.permute.xlu0 %1964
    %v1967 = vsel %vm359, %v1963, 0
    %v1970 = vsel %vm359, %v1965, 0
    %1972 = vmatprep.subr.bf16.mxu0 0
    %1973 = vmatpush1.bf16.xpose.msra.mxu0 %v1970
    %1974 = vmatprep.subr.bf16.mxu0 0
    %1975 = vmatpush1.bf16.xpose.msra.mxu0 0
    %1976 = vmatprep.subr.bf16.mxu0 0
    %1977 = vmatpush1.bf16.xpose.msra.mxu0 0
    %1978 = vmatprep.subr.bf16.mxu0 0
    %1979 = vmatpush1.bf16.xpose.msra.mxu0 0
    %1980 = vmatprep.subr.bf16.mxu0 0
    %1981 = vmatpush1.bf16.xpose.msra.mxu0 0
    %1982 = vmatprep.subr.bf16.mxu0 0
    %1983 = vmatpush1.bf16.xpose.msra.mxu0 0
    %1984 = vmatprep.subr.bf16.mxu0 0
    %1985 = vmatpush1.bf16.xpose.msra.mxu0 0
    %1986 = vmatprep.subr.bf16.mxu0 0
    %1987 = vmatpush1.bf16.xpose.msra.mxu0 0
    %1988 = vmatprep.subr.bf16.mxu0 0
    %1989 = vmatpush1.bf16.xpose.msra.mxu0 0
    %1990 = vmatprep.subr.bf16.mxu0 0
    %1991 = vmatpush1.bf16.xpose.msra.mxu0 0
    %1992 = vmatprep.subr.bf16.mxu0 0
    %1993 = vmatpush1.bf16.xpose.msra.mxu0 0
    %1994 = vmatprep.subr.bf16.mxu0 0
    %1995 = vmatpush1.bf16.xpose.msra.mxu0 0
    %1996 = vmatprep.subr.bf16.mxu0 0
    %1997 = vmatpush1.bf16.xpose.msra.mxu0 0
    %1998 = vmatprep.subr.bf16.mxu0 0
    %1999 = vmatpush1.bf16.xpose.msra.mxu0 0
    %2000 = vmatprep.subr.bf16.mxu0 0
    %2001 = vmatpush1.bf16.xpose.msra.mxu0 0
    %2002 = vmatprep.subr.bf16.mxu0 0
    %2003 = vmatpush1.bf16.xpose.msra.mxu0 0
    %2004 = vmatprep.mubr.bf16.mxu0 0
    %2005 = vmatmul.mubr.bf16.gmra.mrb[0].mxu0 %v1967
    %v2006 = vpop.f32.mrb[0].mxu0
    %v2007 = vadd.f32 0.0, %v2006
    %v2008 = vpop.f32.mrb[0].mxu0
    %v2009 = vpop.f32.mrb[0].mxu0
    %v2010 = vpop.f32.mrb[0].mxu0
    %2011 = vdwg.mxu0
    %v2012 = vmul.f32 %v1957, 0.25
    %v2013 = vmul.f32 %v2007, 0.25
    %v2014 = vsel %vm454, %v2012, -inf
    %2015 = vmax.xlane.f32.xlu0 %v2014
    %v2016 = vpop.xlane.xlu0 %2015
    %v2017 = vsel %vm454, %v2013, -inf
    %2018 = vmax.xlane.f32.xlu0 %v2017
    %v2019 = vpop.xlane.xlu0 %2018
    %v2020 = vsub.f32 %v2012, %v2016
    %v2021 = vsub.f32 %v2013, %v2019
    %v2022 = vmul.f32 %v2020, 1.442695
    %v2023 = vpow.pop %v2022
    %v2024 = vmul.f32 %v2021, 1.442695
    %v2025 = vpow.pop %v2024
    %v2026 = vsel %vm454, %v2023, 0.0
    %2027 = vadd.xlane.f32.xlu0 %v2026
    %v2028 = vpop.xlane.xlu0 %2027
    %v2029 = vsel %vm454, %v2025, 0.0
    %2030 = vadd.xlane.f32.xlu0 %v2029
    %v2031 = vpop.xlane.xlu0 %2030
    %v2032 = vrcp.pop %v2028
    %v2033 = vrcp.pop %v2031
    %v2034 = vmul.f32 %v2023, %v2032
    %v2035 = vmul.f32 %v2025, %v2033
    %v2036 = vpack.c.bf16 %v2034, %v2034
    %v2037 = vpack.c.bf16 %v2035, %v2035
    %2038 = vrot.lane.b32.xlu0 %v479, 16
    %v2039 = vpop.permute.xlu0 %2038
    %v2041 = vsel %vm454, %v2036, 0
    %v2044 = vsel %vm484, %v2039, 0
    %2046 = vmatprep.subr.bf16.mxu0 0
    %2047 = vmatpush1.bf16.msra.mxu0 %v2044
    %2048 = vmatprep.subr.bf16.mxu0 0
    %2049 = vmatpush1.bf16.msra.mxu0 0
    %2050 = vmatprep.subr.bf16.mxu0 0
    %2051 = vmatpush1.bf16.msra.mxu0 0
    %2052 = vmatprep.subr.bf16.mxu0 0
    %2053 = vmatpush1.bf16.msra.mxu0 0
    %2054 = vmatprep.subr.bf16.mxu0 0
    %2055 = vmatpush1.bf16.msra.mxu0 0
    %2056 = vmatprep.subr.bf16.mxu0 0
    %2057 = vmatpush1.bf16.msra.mxu0 0
    %2058 = vmatprep.subr.bf16.mxu0 0
    %2059 = vmatpush1.bf16.msra.mxu0 0
    %2060 = vmatprep.subr.bf16.mxu0 0
    %2061 = vmatpush1.bf16.msra.mxu0 0
    %2062 = vmatprep.subr.bf16.mxu0 0
    %2063 = vmatpush1.bf16.msra.mxu0 0
    %2064 = vmatprep.subr.bf16.mxu0 0
    %2065 = vmatpush1.bf16.msra.mxu0 0
    %2066 = vmatprep.subr.bf16.mxu0 0
    %2067 = vmatpush1.bf16.msra.mxu0 0
    %2068 = vmatprep.subr.bf16.mxu0 0
    %2069 = vmatpush1.bf16.msra.mxu0 0
    %2070 = vmatprep.subr.bf16.mxu0 0
    %2071 = vmatpush1.bf16.msra.mxu0 0
    %2072 = vmatprep.subr.bf16.mxu0 0
    %2073 = vmatpush1.bf16.msra.mxu0 0
    %2074 = vmatprep.subr.bf16.mxu0 0
    %2075 = vmatpush1.bf16.msra.mxu0 0
    %2076 = vmatprep.subr.bf16.mxu0 0
    %2077 = vmatpush1.bf16.msra.mxu0 0
    %2078 = vmatprep.mubr.bf16.mxu0 0
    %2079 = vmatmul.mubr.bf16.gmra.mrb[0].mxu0 %v2041
    %v2080 = vpop.f32.mrb[0].mxu0
    %v2081 = vadd.f32 0.0, %v2080
    %v2082 = vpop.f32.mrb[0].mxu0
    %v2083 = vpop.f32.mrb[0].mxu0
    %v2084 = vpop.f32.mrb[0].mxu0
    %2085 = vdwg.mxu0
    %2086 = vrot.lane.b32.xlu0 %v480, 16
    %v2087 = vpop.permute.xlu0 %2086
    %v2089 = vsel %vm454, %v2037, 0
    %v2092 = vsel %vm484, %v2087, 0
    %2094 = vmatprep.subr.bf16.mxu0 0
    %2095 = vmatpush1.bf16.msra.mxu0 %v2092
    %2096 = vmatprep.subr.bf16.mxu0 0
    %2097 = vmatpush1.bf16.msra.mxu0 0
    %2098 = vmatprep.subr.bf16.mxu0 0
    %2099 = vmatpush1.bf16.msra.mxu0 0
    %2100 = vmatprep.subr.bf16.mxu0 0
    %2101 = vmatpush1.bf16.msra.mxu0 0
    %2102 = vmatprep.subr.bf16.mxu0 0
    %2103 = vmatpush1.bf16.msra.mxu0 0
    %2104 = vmatprep.subr.bf16.mxu0 0
    %2105 = vmatpush1.bf16.msra.mxu0 0
    %2106 = vmatprep.subr.bf16.mxu0 0
    %2107 = vmatpush1.bf16.msra.mxu0 0
    %2108 = vmatprep.subr.bf16.mxu0 0
    %2109 = vmatpush1.bf16.msra.mxu0 0
    %2110 = vmatprep.subr.bf16.mxu0 0
    %2111 = vmatpush1.bf16.msra.mxu0 0
    %2112 = vmatprep.subr.bf16.mxu0 0
    %2113 = vmatpush1.bf16.msra.mxu0 0
    %2114 = vmatprep.subr.bf16.mxu0 0
    %2115 = vmatpush1.bf16.msra.mxu0 0
    %2116 = vmatprep.subr.bf16.mxu0 0
    %2117 = vmatpush1.bf16.msra.mxu0 0
    %2118 = vmatprep.subr.bf16.mxu0 0
    %2119 = vmatpush1.bf16.msra.mxu0 0
    %2120 = vmatprep.subr.bf16.mxu0 0
    %2121 = vmatpush1.bf16.msra.mxu0 0
    %2122 = vmatprep.subr.bf16.mxu0 0
    %2123 = vmatpush1.bf16.msra.mxu0 0
    %2124 = vmatprep.subr.bf16.mxu0 0
    %2125 = vmatpush1.bf16.msra.mxu0 0
    %2126 = vmatprep.mubr.bf16.mxu0 0
    %2127 = vmatmul.mubr.bf16.gmra.mrb[0].mxu0 %v2089
    %v2128 = vpop.f32.mrb[0].mxu0
    %v2129 = vadd.f32 0.0, %v2128
    %v2130 = vpop.f32.mrb[0].mxu0
    %v2131 = vpop.f32.mrb[0].mxu0
    %v2132 = vpop.f32.mrb[0].mxu0
    %2133 = vdwg.mxu0
    %2136 = vrot.lane.b32.xlu0 %v748, 16
    %v2137 = vpop.permute.xlu0 %2136
    %2138 = vrot.lane.b32.xlu0 %v797, 16
    %v2139 = vpop.permute.xlu0 %2138
    %2144 = vrot.lane.b32.xlu0 %v971, 32
    %v2145 = vpop.permute.xlu0 %2144
    %2146 = vrot.lane.b32.xlu0 %v1019, 32
    %v2147 = vpop.permute.xlu0 %2146
    %2152 = vrot.lane.b32.xlu0 %v1193, 48
    %v2153 = vpop.permute.xlu0 %2152
    %2154 = vrot.lane.b32.xlu0 %v1241, 48
    %v2155 = vpop.permute.xlu0 %2154
    %2160 = vrot.lane.b32.xlu0 %v1415, 64
    %v2161 = vpop.permute.xlu0 %2160
    %2162 = vrot.lane.b32.xlu0 %v1463, 64
    %v2163 = vpop.permute.xlu0 %2162
    %2168 = vrot.lane.b32.xlu0 %v1637, 80
    %v2169 = vpop.permute.xlu0 %2168
    %2170 = vrot.lane.b32.xlu0 %v1685, 80
    %v2171 = vpop.permute.xlu0 %2170
    %2176 = vrot.lane.b32.xlu0 %v1859, 96
    %v2177 = vpop.permute.xlu0 %2176
    %2178 = vrot.lane.b32.xlu0 %v1907, 96
    %v2179 = vpop.permute.xlu0 %2178
    %2184 = vrot.lane.b32.xlu0 %v2081, 112
    %v2185 = vpop.permute.xlu0 %2184
    %2186 = vrot.lane.b32.xlu0 %v2129, 112
    %v2187 = vpop.permute.xlu0 %2186
    %v2190 = vsel %vm359, %v523, %v2137
    %v2191 = vsel %vm359, %v569, %v2139
    %vm2192 = vcmask 261120
    %v2193 = vsel %vm2192, %v2190, %v2145
    %v2194 = vsel %vm2192, %v2191, %v2147
    %vm2195 = vcmask 392192
    %v2196 = vsel %vm2195, %v2193, %v2153
    %v2197 = vsel %vm2195, %v2194, %v2155
    %vm2198 = vcmask 523264
    %v2199 = vsel %vm2198, %v2196, %v2161
    %v2200 = vsel %vm2198, %v2197, %v2163
    %vm2201 = vcmask 654336
    %v2202 = vsel %vm2201, %v2199, %v2169
    %v2203 = vsel %vm2201, %v2200, %v2171
    %vm2204 = vcmask 785408
    %v2205 = vsel %vm2204, %v2202, %v2177
    %v2206 = vsel %vm2204, %v2203, %v2179
    %vm2207 = vcmask 916480
    %v2208 = vsel %vm2207, %v2205, %v2185
    %v2209 = vsel %vm2207, %v2206, %v2187
    %v2210 = vld [vmem:[#allocation10] sm:$0xf]
    %v2211 = vld [vmem:[#allocation10 + $0x4] sm:$0xf]
    %v2212 = vld [vmem:[#allocation10 + $0x8] sm:$0xf]
    %v2213 = vld [vmem:[#allocation10 + $0xc] sm:$0xf]
    %v2214 = vld [vmem:[#allocation10 + $0x10] sm:$0xf]
    %v2215 = vld [vmem:[#allocation10 + $0x14] sm:$0xf]
    %v2216 = vld [vmem:[#allocation10 + $0x18] sm:$0xf]
    %v2217 = vld [vmem:[#allocation10 + $0x1c] sm:$0xf]
    %v2218 = vld [vmem:[#allocation10 + $0x20] sm:$0xf]
    %v2219 = vld [vmem:[#allocation10 + $0x24] sm:$0xf]
    %v2220 = vld [vmem:[#allocation10 + $0x28] sm:$0xf]
    %v2221 = vld [vmem:[#allocation10 + $0x2c] sm:$0xf]
    %v2222 = vld [vmem:[#allocation10 + $0x30] sm:$0xf]
    %v2223 = vld [vmem:[#allocation10 + $0x34] sm:$0xf]
    %v2224 = vld [vmem:[#allocation10 + $0x38] sm:$0xf]
    %v2225 = vld [vmem:[#allocation10 + $0x3c] sm:$0xf]
    %v2226 = vpack.c.bf16 %v2209, %v2208
    %v2243 = vunpack.c.l.b16 %v2210
    %v2244 = vunpack.c.l.b16 %v2211
    %v2245 = vunpack.c.l.b16 %v2212
    %v2246 = vunpack.c.l.b16 %v2213
    %v2247 = vunpack.c.l.b16 %v2214
    %v2248 = vunpack.c.l.b16 %v2215
    %v2249 = vunpack.c.l.b16 %v2216
    %v2250 = vunpack.c.l.b16 %v2217
    %v2251 = vunpack.c.l.b16 %v2218
    %v2252 = vunpack.c.l.b16 %v2219
    %v2253 = vunpack.c.l.b16 %v2220
    %v2254 = vunpack.c.l.b16 %v2221
    %v2255 = vunpack.c.l.b16 %v2222
    %v2256 = vunpack.c.l.b16 %v2223
    %v2257 = vunpack.c.l.b16 %v2224
    %v2258 = vunpack.c.l.b16 %v2225
    %v2259 = vpack.c.b16 %v2244, %v2243
    %v2260 = vpack.c.b16 %v2246, %v2245
    %v2261 = vpack.c.b16 %v2248, %v2247
    %v2262 = vpack.c.b16 %v2250, %v2249
    %v2263 = vpack.c.b16 %v2252, %v2251
    %v2264 = vpack.c.b16 %v2254, %v2253
    %v2265 = vpack.c.b16 %v2256, %v2255
    %v2266 = vpack.c.b16 %v2258, %v2257
    %2275 = vmatprep.subr.bf16.mxu0 0
    %2276 = vmatpush1.bf16.msra.mxu0 %v2259
    %2277 = vmatprep.subr.bf16.mxu0 0
    %2278 = vmatpush1.bf16.msra.mxu0 %v2260
    %2279 = vmatprep.subr.bf16.mxu0 0
    %2280 = vmatpush1.bf16.msra.mxu0 %v2261
    %2281 = vmatprep.subr.bf16.mxu0 0
    %2282 = vmatpush1.bf16.msra.mxu0 %v2262
    %2283 = vmatprep.subr.bf16.mxu0 0
    %2284 = vmatpush1.bf16.msra.mxu0 %v2263
    %2285 = vmatprep.subr.bf16.mxu0 0
    %2286 = vmatpush1.bf16.msra.mxu0 %v2264
    %2287 = vmatprep.subr.bf16.mxu0 0
    %2288 = vmatpush1.bf16.msra.mxu0 %v2265
    %2289 = vmatprep.subr.bf16.mxu0 0
    %2290 = vmatpush1.bf16.msra.mxu0 %v2266
    %2291 = vmatprep.subr.bf16.mxu0 0
    %2292 = vmatpush1.bf16.msra.mxu0 0
    %2293 = vmatprep.subr.bf16.mxu0 0
    %2294 = vmatpush1.bf16.msra.mxu0 0
    %2295 = vmatprep.subr.bf16.mxu0 0
    %2296 = vmatpush1.bf16.msra.mxu0 0
    %2297 = vmatprep.subr.bf16.mxu0 0
    %2298 = vmatpush1.bf16.msra.mxu0 0
    %2299 = vmatprep.subr.bf16.mxu0 0
    %2300 = vmatpush1.bf16.msra.mxu0 0
    %2301 = vmatprep.subr.bf16.mxu0 0
    %2302 = vmatpush1.bf16.msra.mxu0 0
    %2303 = vmatprep.subr.bf16.mxu0 0
    %2304 = vmatpush1.bf16.msra.mxu0 0
    %2305 = vmatprep.subr.bf16.mxu0 0
    %2306 = vmatpush1.bf16.msra.mxu0 0
    %2307 = vmatprep.mubr.bf16.mxu0 0
    %2308 = vmatmul.mubr.bf16.gmra.mrb[0].mxu0 %v2226
    %v2309 = vpop.f32.mrb[0].mxu0
    %v2310 = vadd.f32 0.0, %v2309
    %v2311 = vpop.f32.mrb[0].mxu0
    %v2312 = vpop.f32.mrb[0].mxu0
    %v2313 = vadd.f32 0.0, %v2312
    %v2314 = vpop.f32.mrb[0].mxu0
    %2315 = vdwg.mxu0
    %v2316 = vadd.f32 %v108, %v2310
    %v2317 = vadd.f32 %v109, %v2313
    %2318 = vst [vmem:[#allocation11] sm:$0xff] %v2316
    %2319 = vst [vmem:[#allocation11 + $0x8] sm:$0xff] %v2317
    %v2320 = vadd.f32 %v2316, %v2317
    %v2321 = vrot.slane %v2320, 4
    %v2322 = vadd.f32 %v2320, %v2321
    %v2323 = vrot.slane %v2322, 2
    %v2324 = vadd.f32 %v2322, %v2323
    %v2325 = vrot.slane %v2324, 1
    %v2326 = vadd.f32 %v2324, %v2325
    %2327 = vst [vmem:[#allocation12] sm:$0x1] %v2326
    %v2328 = vmul.f32 %v2316, %v2316
    %v2329 = vmul.f32 %v2317, %v2317
    %v2330 = vadd.f32 %v2328, %v2329
    %v2331 = vrot.slane %v2330, 4
    %v2332 = vadd.f32 %v2330, %v2331
    %v2333 = vrot.slane %v2332, 2
    %v2334 = vadd.f32 %v2332, %v2333
    %v2335 = vrot.slane %v2334, 1
    %v2336 = vadd.f32 %v2334, %v2335
    %2337 = vst [vmem:[#allocation14] sm:$0x1] %v2336
    // Predicated region
    $region42: #{tpu_custom_call.1} parent=1 // pred_check
      _
    $region43: #{tpu_custom_call.1} parent=1 // pred_check_branch
      %2339 = sbr.rel (0) target = $region45
    $region44: #{tpu_custom_call.1} parent=1 // pred_region
      %s2341 = ssub.s32 256, 256
      %2342 = vsyncadd [#allocation4], %s2341
      %s2343 = sshll.u32 [#allocation11], 4
      %s2344 = int_to_ptr.vmem [resolvable:$true] %s2343
      %2349 = dma.vmem_to_hbm [thread:$0]  %s2344, 256, %s5, [#allocation4], 128, 128, 8
    $region45: #{tpu_custom_call.1} parent=1 // pred_fallthru
      _
    // Predicated region
    $region46: #{tpu_custom_call.1} parent=1 // pred_check
      _
    $region47: #{tpu_custom_call.1} parent=1 // pred_check_branch
      %2351 = sbr.rel (0) target = $region49
    $region48: #{tpu_custom_call.1} parent=1 // pred_region
      %s2353 = ssub.s32 16, 16
      %2354 = vsyncadd [#allocation13], %s2353
      %s2356 = sshll.u32 [#allocation12], 4
      %s2357 = int_to_ptr.vmem [resolvable:$true] %s2356
      %2359 = dma.vmem_to_hbm [thread:$0]  %s2357, 16, %s6, [#allocation13]
    $region49: #{tpu_custom_call.1} parent=1 // pred_fallthru
      _
    // Predicated region
    $region50: #{tpu_custom_call.1} parent=1 // pred_check
      _
    $region51: #{tpu_custom_call.1} parent=1 // pred_check_branch
      %2361 = sbr.rel (0) target = $region53
    $region52: #{tpu_custom_call.1} parent=1 // pred_region
      %s2363 = ssub.s32 16, 16
      %2364 = vsyncadd [#allocation13], %s2363
      %s2366 = sshll.u32 [#allocation14], 4
      %s2367 = int_to_ptr.vmem [resolvable:$true] %s2366
      %2369 = dma.vmem_to_hbm [thread:$0]  %s2367, 16, %s7, [#allocation13]
    $region53: #{tpu_custom_call.1} parent=1 // pred_fallthru
      _
    // Predicated region
    $region54: #{tpu_custom_call.1} parent=1 // pred_check
      _
    $region55: #{tpu_custom_call.1} parent=1 // pred_check_branch
      %2371 = sbr.rel (0) target = $region57
    $region56: #{tpu_custom_call.1} parent=1 // pred_region
      %2372 = dma.done [#allocation4], 256
    $region57: #{tpu_custom_call.1} parent=1 // pred_fallthru
      _
    // Predicated region
    $region58: #{tpu_custom_call.1} parent=1 // pred_check
      _
    $region59: #{tpu_custom_call.1} parent=1 // pred_check_branch
      %2374 = sbr.rel (0) target = $region61
    $region60: #{tpu_custom_call.1} parent=1 // pred_region
      %2375 = dma.done [#allocation13], 16
    $region61: #{tpu_custom_call.1} parent=1 // pred_fallthru
      _
    // Predicated region
    $region62: #{tpu_custom_call.1} parent=1 // pred_check
      _
    $region63: #{tpu_custom_call.1} parent=1 // pred_check_branch
      %2377 = sbr.rel (0) target = $region65
    $region64: #{tpu_custom_call.1} parent=1 // pred_region
      %2378 = dma.done [#allocation13], 16
    $region65: #{tpu_custom_call.1} parent=1 // pred_fallthru
      _
    %2379 = vsyncpa [#allocation3], 1
    %2380 = vsyncpa [#allocation6], 1
    %2381 = vsyncpa [#allocation9], 1
    %2382 = vsyncpa [#allocation4], 1
    %2383 = vsyncpa [#allocation13], 1

</llo_original>
